<compile_context>
chip_gen: v7x
topology: tpu7x:2x2x1
jax: 0.10.0
libtpu: 0.0.40
codegen_flags: <defaults>
</compile_context>

<pallas_src>
import functools

import jax
import jax.numpy as jnp
from jax.experimental import pallas as pl
from jax.experimental.pallas import tpu as pltpu

_LN_EPS = 1e-5  # torch.nn.LayerNorm default


def _layer_norm(h, gamma, beta):
    """LayerNorm over the last dim, biased variance, eps inside the sqrt."""
    mu = jnp.mean(h, axis=-1, keepdims=True)
    var = jnp.mean(jnp.square(h - mu), axis=-1, keepdims=True)
    return (h - mu) * jax.lax.rsqrt(var + _LN_EPS) * gamma + beta


def _encoder_layer_kernel(
    xq_ref,          # (1, Tq, D)  query-row tile of x (residual + Q source)
    xf_ref,          # (1, S,  D)  full sequence x (K/V source)
    wq_ref,          # (D, D)  bf16
    wk_ref,          # (D, D)  bf16
    wv_ref,          # (D, D)  bf16
    wo_ref,          # (D, D)  bf16
    w1_ref,          # (D, F)  bf16
    w2_ref,          # (F, D)  bf16
    g1_ref, b1_ref,  # (1, D)  f32
    g2_ref, b2_ref,  # (1, D)  f32
    *rest,           # ([mask_ref], o_ref, ctx_ref)
    n_head: int,
    d_head: int,
    has_mask: bool,
):
    if has_mask:
        mask_ref, o_ref, ctx_ref = rest
    else:
        o_ref, ctx_ref = rest

    scale = float(d_head) ** -0.5

    xq_f32 = xq_ref[0].astype(jnp.float32)        # (Tq, D) residual path
    xq = xq_f32.astype(jnp.bfloat16)              # MXU operand
    xf = xf_ref[0].astype(jnp.bfloat16)           # (S, D)

    # ---- wide projections: full-D output width, lane-dense MXU ------------
    q = jnp.dot(xq, wq_ref[...], preferred_element_type=jnp.float32)   # (Tq, D)
    k = jnp.dot(xf, wk_ref[...], preferred_element_type=jnp.float32)   # (S,  D)
    v = jnp.dot(xf, wv_ref[...], preferred_element_type=jnp.float32)   # (S,  D)

    if has_mask:
        if len(mask_ref.shape) == 3:
            masked = mask_ref[0] != 0             # (Tq, S); True == masked out
        else:
            masked = mask_ref[...] != 0

    # ---- per-head attention (static unroll; H is small) -------------------
    # TODO(synk): for large H, use a head grid axis / lax.fori_loop so all
    # heads' score tiles are never simultaneously live.
    for h in range(n_head):
        lo, hi = h * d_head, (h + 1) * d_head
        qh = q[:, lo:hi].astype(jnp.bfloat16)     # (Tq, Dh)
        kh = k[:, lo:hi].astype(jnp.bfloat16)     # (S,  Dh)
        vh = v[:, lo:hi].astype(jnp.bfloat16)     # (S,  Dh)

        # scores = qh @ kh^T (contraction on Dh, no explicit transpose)
        s = jax.lax.dot_general(
            qh, kh, (((1,), (1,)), ((), ())),
            preferred_element_type=jnp.float32) * scale                # (Tq, S)
        if has_mask:
            s = jnp.where(masked, -1e30, s)       # masked_fill(mask, -inf)

        # numerically-stable softmax; reciprocal on the EUP slot
        s = s - jnp.max(s, axis=-1, keepdims=True)
        p = jnp.exp(s)
        p = p * pl.reciprocal(jnp.sum(p, axis=-1, keepdims=True), approx=True)
        # TODO(synk): attention dropout omitted (eval-mode identity).

        oh = jnp.dot(p.astype(jnp.bfloat16), vh,
                     preferred_element_type=jnp.float32)               # (Tq, Dh)
        # lane-aligned slot of the per-tile context buffer
        ctx_ref[:, lo:hi] = oh

    # single wide output projection: (Tq, D) @ (D, D)
    attn = jnp.dot(ctx_ref[...].astype(jnp.bfloat16), wo_ref[...],
                   preferred_element_type=jnp.float32)                 # (Tq, D)

    # ---- residual + LayerNorm 1 -------------------------------------------
    h1 = _layer_norm(xq_f32 + attn, g1_ref[...], b1_ref[...])

    # ---- FFN: Linear -> ReLU -> Linear, residual, LayerNorm 2 --------------
    f = jnp.maximum(
        jnp.dot(h1.astype(jnp.bfloat16), w1_ref[...],
                preferred_element_type=jnp.float32), 0.0)
    f = jnp.dot(f.astype(jnp.bfloat16), w2_ref[...],
                preferred_element_type=jnp.float32)
    # TODO(synk): FFN dropout + final dropout omitted (eval-mode identity).
    out = _layer_norm(h1 + f, g2_ref[...], b2_ref[...])

    o_ref[0] = out.astype(o_ref.dtype)


def encoder_layer_forward(x, params, n_head, mask=None, *, s_tile=512):
    """x: (B, S, D) float32.  params use (in, out) weight convention."""
    B, S, D = x.shape
    assert D % n_head == 0
    d_head = D // n_head
    Fdim = params["w1"].shape[1]

    # Query-row tiling (one tile at toy sizes; bounds VMEM at production S).
    ts = S if S <= s_tile else s_tile
    assert S % ts == 0, "S must be divisible by the query tile size"
    num_s = S // ts

    bf16 = jnp.bfloat16
    wq = params["wq"].astype(bf16)
    wk = params["wk"].astype(bf16)
    wv = params["wv"].astype(bf16)
    wo = params["wo"].astype(bf16)
    w1 = params["w1"].astype(bf16)
    w2 = params["w2"].astype(bf16)
    g1 = params["ln1_g"].reshape(1, D).astype(jnp.float32)
    b1 = params["ln1_b"].reshape(1, D).astype(jnp.float32)
    g2 = params["ln2_g"].reshape(1, D).astype(jnp.float32)
    b2 = params["ln2_b"].reshape(1, D).astype(jnp.float32)

    def bcast(shape):
        # Broadcast block: index never changes -> single-buffer it.
        return pl.BlockSpec(shape, lambda b, s: (0,) * len(shape),
                            pipeline_mode=pl.Buffered(1))

    args = [x, x, wq, wk, wv, wo, w1, w2, g1, b1, g2, b2]
    in_specs = [
        pl.BlockSpec((1, ts, D), lambda b, s: (b, s, 0)),   # x (query tile)
        pl.BlockSpec((1, S, D), lambda b, s: (b, 0, 0)),    # x (full, for K/V)
        bcast((D, D)), bcast((D, D)), bcast((D, D)), bcast((D, D)),
        bcast((D, Fdim)), bcast((Fdim, D)),
        bcast((1, D)), bcast((1, D)), bcast((1, D)), bcast((1, D)),
    ]

    has_mask = mask is not None
    if has_mask:
        m = mask.astype(jnp.int8)       # compact; nonzero == masked out
        args.append(m)
        if m.ndim == 2:
            # one (S,S) mask shared across the batch (batch-constant index map)
            in_specs.append(pl.BlockSpec((ts, S), lambda b, s: (s, 0)))
        else:
            in_specs.append(pl.BlockSpec((1, ts, S), lambda b, s: (b, s, 0)))

    kernel = functools.partial(
        _encoder_layer_kernel, n_head=n_head, d_head=d_head, has_mask=has_mask)

    return pl.pallas_call(
        kernel,
        out_shape=jax.ShapeDtypeStruct((B, S, D), x.dtype),
        grid_spec=pltpu.PrefetchScalarGridSpec(
            num_scalar_prefetch=0,
            grid=(B, num_s),
            in_specs=in_specs,
            out_specs=pl.BlockSpec((1, ts, D), lambda b, s: (b, s, 0)),
            scratch_shapes=[pltpu.VMEM((ts, D), jnp.float32)],   # head context
        ),
        compiler_params=pltpu.CompilerParams(
            dimension_semantics=("parallel", "parallel"),   # megacore sharding
            vmem_limit_bytes=48 * 1024 * 1024,              # headroom on v7x
        ),
    )(*args)


def encoder_layer_ref(x, params, n_head, mask=None):
    """Pure-JAX f32 reference mirroring the PyTorch EncoderLayer (eval mode)."""
    B, S, D = x.shape
    dh = D // n_head

    def ln(h, g, b):
        mu = h.mean(-1, keepdims=True)
        var = ((h - mu) ** 2).mean(-1, keepdims=True)
        return (h - mu) / jnp.sqrt(var + _LN_EPS) * g + b

    def heads(w):
        return (x @ w).reshape(B, S, n_head, dh).transpose(0, 2, 1, 3)

    q, k, v = heads(params["wq"]), heads(params["wk"]), heads(params["wv"])
    s = jnp.einsum("bhqd,bhkd->bhqk", q, k) * (dh ** -0.5)
    if mask is not None:
        m = mask if mask.ndim == 3 else jnp.broadcast_to(mask[None], (B, S, S))
        s = jnp.where(m[:, None, :, :].astype(bool), -1e30, s)
    p = jax.nn.softmax(s, axis=-1)
    o = jnp.einsum("bhqk,bhkd->bhqd", p, v).transpose(0, 2, 1, 3).reshape(B, S, D)
    o = o @ params["wo"]
    h1 = ln(x + o, params["ln1_g"], params["ln1_b"])
    f = jnp.maximum(h1 @ params["w1"], 0.0) @ params["w2"]
    return ln(h1 + f, params["ln2_g"], params["ln2_b"])


if __name__ == "__main__":
    # Small shapes consistent with the module: batch=2, seq=8, d_model=32,
    # n_head=4, d_ff=64.  (Production sizing wants D/Dh/F multiples of 128.)
    B, S, D, H, F = 2, 8, 32, 4, 64

    key = jax.random.PRNGKey(0)
    ks = jax.random.split(key, 11)
    x = jax.random.normal(ks[0], (B, S, D), dtype=jnp.float32)

    def init(k, shape, scale):
        return jax.random.normal(k, shape, dtype=jnp.float32) * scale

    params = {
        "wq": init(ks[1], (D, D), D ** -0.5),
        "wk": init(ks[2], (D, D), D ** -0.5),
        "wv": init(ks[3], (D, D), D ** -0.5),
        "wo": init(ks[4], (D, D), D ** -0.5),
        "w1": init(ks[5], (D, F), D ** -0.5),
        "w2": init(ks[6], (F, D), F ** -0.5),
        "ln1_g": 1.0 + 0.1 * jax.random.normal(ks[7], (D,), jnp.float32),
        "ln1_b": 0.1 * jax.random.normal(ks[8], (D,), jnp.float32),
        "ln2_g": 1.0 + 0.1 * jax.random.normal(ks[9], (D,), jnp.float32),
        "ln2_b": 0.1 * jax.random.normal(ks[10], (D,), jnp.float32),
    }

    # ---- no-mask path -------------------------------------------------------
    out = jax.block_until_ready(encoder_layer_forward(x, params, n_head=H))
    ref = encoder_layer_ref(x, params, n_head=H)
    assert out.shape == (B, S, D)
    # Kernel runs its matmuls with bf16 MXU operands (f32 accumulation); the
    # reference is pure f32 — genuine bugs would be O(1) off.
    err = float(jnp.max(jnp.abs(out - ref)))
    assert bool(jnp.allclose(out, ref, atol=1e-1, rtol=1e-1)), \
        f"no-mask max |err| = {err}"

    # ---- 2-D causal mask path (True == masked out, as masked_fill(mask, -inf))
    causal_mask = jnp.triu(jnp.ones((S, S), dtype=jnp.int32), k=1)
    out_m = jax.block_until_ready(
        encoder_layer_forward(x, params, n_head=H, mask=causal_mask))
    ref_m = encoder_layer_ref(x, params, n_head=H, mask=causal_mask)
    err_m = float(jnp.max(jnp.abs(out_m - ref_m)))
    assert bool(jnp.allclose(out_m, ref_m, atol=1e-1, rtol=1e-1)), \
        f"masked max |err| = {err_m}"

    print("KERNEL_OK")
</pallas_src>

<mosaic_0001>
module attributes {stable_mosaic.version = 11 : i64} {
  func.func @_encoder_layer_kernel(%arg0: i32, %arg1: i32, %arg2: memref<1x8x32xf32, #tpu.memory_space<vmem>>, %arg3: memref<1x8x32xf32, #tpu.memory_space<vmem>>, %arg4: memref<32x32xbf16, #tpu.memory_space<vmem>>, %arg5: memref<32x32xbf16, #tpu.memory_space<vmem>>, %arg6: memref<32x32xbf16, #tpu.memory_space<vmem>>, %arg7: memref<32x32xbf16, #tpu.memory_space<vmem>>, %arg8: memref<32x64xbf16, #tpu.memory_space<vmem>>, %arg9: memref<64x32xbf16, #tpu.memory_space<vmem>>, %arg10: memref<1x32xf32, #tpu.memory_space<vmem>>, %arg11: memref<1x32xf32, #tpu.memory_space<vmem>>, %arg12: memref<1x32xf32, #tpu.memory_space<vmem>>, %arg13: memref<1x32xf32, #tpu.memory_space<vmem>>, %arg14: memref<1x8x32xf32, #tpu.memory_space<vmem>>, %arg15: memref<8x32xf32, #tpu.memory_space<vmem>>) attributes {dimension_semantics = [#tpu.dimension_semantics<parallel>, #tpu.dimension_semantics<parallel>], iteration_bounds = array<i64: 2, 1>, scalar_prefetch = 0 : i64, scratch_operands = 1 : i64, tpu.core_type = #tpu.core_type<tc>, window_params = [{transform_indices = @transform_0, window_bounds = array<i64: 1, 8, 32>}, {transform_indices = @transform_1, window_bounds = array<i64: 1, 8, 32>}, {pipeline_mode = #tpu.pipeline_mode<synchronous>, transform_indices = @transform_2, window_bounds = array<i64: 32, 32>}, {pipeline_mode = #tpu.pipeline_mode<synchronous>, transform_indices = @transform_3, window_bounds = array<i64: 32, 32>}, {pipeline_mode = #tpu.pipeline_mode<synchronous>, transform_indices = @transform_4, window_bounds = array<i64: 32, 32>}, {pipeline_mode = #tpu.pipeline_mode<synchronous>, transform_indices = @transform_5, window_bounds = array<i64: 32, 32>}, {pipeline_mode = #tpu.pipeline_mode<synchronous>, transform_indices = @transform_6, window_bounds = array<i64: 32, 64>}, {pipeline_mode = #tpu.pipeline_mode<synchronous>, transform_indices = @transform_7, window_bounds = array<i64: 64, 32>}, {pipeline_mode = #tpu.pipeline_mode<synchronous>, transform_indices = @transform_8, window_bounds = array<i64: 1, 32>}, {pipeline_mode = #tpu.pipeline_mode<synchronous>, transform_indices = @transform_9, window_bounds = array<i64: 1, 32>}, {pipeline_mode = #tpu.pipeline_mode<synchronous>, transform_indices = @transform_10, window_bounds = array<i64: 1, 32>}, {pipeline_mode = #tpu.pipeline_mode<synchronous>, transform_indices = @transform_11, window_bounds = array<i64: 1, 32>}, {transform_indices = @transform_12, window_bounds = array<i64: 1, 8, 32>}]} {
    %c0 = arith.constant 0 : index
    %c0_0 = arith.constant 0 : index
    %c0_1 = arith.constant 0 : index
    %0 = vector.load %arg2[%c0, %c0_0, %c0_1] : memref<1x8x32xf32, #tpu.memory_space<vmem>>, vector<1x8x32xf32>
    %1 = vector.shape_cast %0 : vector<1x8x32xf32> to vector<8x32xf32>
    %2 = arith.truncf %1 : vector<8x32xf32> to vector<8x32xbf16>
    %c0_2 = arith.constant 0 : index
    %c0_3 = arith.constant 0 : index
    %c0_4 = arith.constant 0 : index
    %3 = vector.load %arg3[%c0_2, %c0_3, %c0_4] : memref<1x8x32xf32, #tpu.memory_space<vmem>>, vector<1x8x32xf32>
    %4 = vector.shape_cast %3 : vector<1x8x32xf32> to vector<8x32xf32>
    %5 = arith.truncf %4 : vector<8x32xf32> to vector<8x32xbf16>
    %c0_5 = arith.constant 0 : index
    %c0_6 = arith.constant 0 : index
    %6 = vector.load %arg4[%c0_5, %c0_6] : memref<32x32xbf16, #tpu.memory_space<vmem>>, vector<32x32xbf16>
    %cst = arith.constant dense<0.000000e+00> : vector<8x32xf32>
    %7 = tpu.matmul %2, %6, %cst {dimension_numbers = #tpu.dot_dimension_numbers<[1], [0], [0], [1], [0, 0, 1, 1], [], []>} : vector<8x32xbf16>, vector<32x32xbf16>, vector<8x32xf32> -> vector<8x32xf32>
    %c0_7 = arith.constant 0 : index
    %c0_8 = arith.constant 0 : index
    %8 = vector.load %arg5[%c0_7, %c0_8] : memref<32x32xbf16, #tpu.memory_space<vmem>>, vector<32x32xbf16>
    %cst_9 = arith.constant dense<0.000000e+00> : vector<8x32xf32>
    %9 = tpu.matmul %5, %8, %cst_9 {dimension_numbers = #tpu.dot_dimension_numbers<[1], [0], [0], [1], [0, 0, 1, 1], [], []>} : vector<8x32xbf16>, vector<32x32xbf16>, vector<8x32xf32> -> vector<8x32xf32>
    %c0_10 = arith.constant 0 : index
    %c0_11 = arith.constant 0 : index
    %10 = vector.load %arg6[%c0_10, %c0_11] : memref<32x32xbf16, #tpu.memory_space<vmem>>, vector<32x32xbf16>
    %cst_12 = arith.constant dense<0.000000e+00> : vector<8x32xf32>
    %11 = tpu.matmul %5, %10, %cst_12 {dimension_numbers = #tpu.dot_dimension_numbers<[1], [0], [0], [1], [0, 0, 1, 1], [], []>} : vector<8x32xbf16>, vector<32x32xbf16>, vector<8x32xf32> -> vector<8x32xf32>
    %12 = vector.extract_strided_slice %7 {offsets = [0, 0], sizes = [8, 8], strides = [1, 1]} : vector<8x32xf32> to vector<8x8xf32>
    %13 = arith.truncf %12 : vector<8x8xf32> to vector<8x8xbf16>
    %14 = vector.extract_strided_slice %9 {offsets = [0, 0], sizes = [8, 8], strides = [1, 1]} : vector<8x32xf32> to vector<8x8xf32>
    %15 = arith.truncf %14 : vector<8x8xf32> to vector<8x8xbf16>
    %16 = vector.extract_strided_slice %11 {offsets = [0, 0], sizes = [8, 8], strides = [1, 1]} : vector<8x32xf32> to vector<8x8xf32>
    %17 = arith.truncf %16 : vector<8x8xf32> to vector<8x8xbf16>
    %cst_13 = arith.constant dense<0.000000e+00> : vector<8x8xf32>
    %18 = tpu.matmul %13, %15, %cst_13 {dimension_numbers = #tpu.dot_dimension_numbers<[1], [1], [0], [0], [0, 0, 1, 0], [], []>} : vector<8x8xbf16>, vector<8x8xbf16>, vector<8x8xf32> -> vector<8x8xf32>
    %cst_14 = arith.constant 0.353553385 : f32
    %19 = vector.broadcast %cst_14 : f32 to vector<8x8xf32>
    %20 = arith.mulf %18, %19 : vector<8x8xf32>
    %cst_15 = arith.constant dense<0xFF800000> : vector<8xf32>
    %21 = vector.multi_reduction <maximumf>, %20, %cst_15 [1] : vector<8x8xf32> to vector<8xf32>
    %22 = vector.shape_cast %21 : vector<8xf32> to vector<8x1xf32>
    %23 = vector.broadcast %22 : vector<8x1xf32> to vector<8x8xf32>
    %24 = arith.subf %20, %23 : vector<8x8xf32>
    %25 = math.exp %24 : vector<8x8xf32>
    %cst_16 = arith.constant dense<0.000000e+00> : vector<8xf32>
    %26 = vector.multi_reduction <add>, %25, %cst_16 [1] : vector<8x8xf32> to vector<8xf32>
    %27 = vector.shape_cast %26 : vector<8xf32> to vector<8x1xf32>
    %28 = tpu.reciprocal %27 {approx = true} : vector<8x1xf32> -> vector<8x1xf32>
    %29 = vector.broadcast %28 : vector<8x1xf32> to vector<8x8xf32>
    %30 = arith.mulf %25, %29 : vector<8x8xf32>
    %31 = arith.truncf %30 : vector<8x8xf32> to vector<8x8xbf16>
    %cst_17 = arith.constant dense<0.000000e+00> : vector<8x8xf32>
    %32 = tpu.matmul %31, %17, %cst_17 {dimension_numbers = #tpu.dot_dimension_numbers<[1], [0], [0], [1], [0, 0, 1, 1], [], []>} : vector<8x8xbf16>, vector<8x8xbf16>, vector<8x8xf32> -> vector<8x8xf32>
    %c0_18 = arith.constant 0 : index
    %c0_19 = arith.constant 0 : index
    %33 = vector.load %arg15[%c0_18, %c0_19] : memref<8x32xf32, #tpu.memory_space<vmem>>, vector<8x8xf32>
    tpu.vector_store %arg15[%c0_18, %c0_19], %32 {strides = array<i32>} : memref<8x32xf32, #tpu.memory_space<vmem>>, vector<8x8xf32>,
    %34 = vector.extract_strided_slice %7 {offsets = [0, 8], sizes = [8, 8], strides = [1, 1]} : vector<8x32xf32> to vector<8x8xf32>
    %35 = arith.truncf %34 : vector<8x8xf32> to vector<8x8xbf16>
    %36 = vector.extract_strided_slice %9 {offsets = [0, 8], sizes = [8, 8], strides = [1, 1]} : vector<8x32xf32> to vector<8x8xf32>
    %37 = arith.truncf %36 : vector<8x8xf32> to vector<8x8xbf16>
    %38 = vector.extract_strided_slice %11 {offsets = [0, 8], sizes = [8, 8], strides = [1, 1]} : vector<8x32xf32> to vector<8x8xf32>
    %39 = arith.truncf %38 : vector<8x8xf32> to vector<8x8xbf16>
    %cst_20 = arith.constant dense<0.000000e+00> : vector<8x8xf32>
    %40 = tpu.matmul %35, %37, %cst_20 {dimension_numbers = #tpu.dot_dimension_numbers<[1], [1], [0], [0], [0, 0, 1, 0], [], []>} : vector<8x8xbf16>, vector<8x8xbf16>, vector<8x8xf32> -> vector<8x8xf32>
    %cst_21 = arith.constant 0.353553385 : f32
    %41 = vector.broadcast %cst_21 : f32 to vector<8x8xf32>
    %42 = arith.mulf %40, %41 : vector<8x8xf32>
    %cst_22 = arith.constant dense<0xFF800000> : vector<8xf32>
    %43 = vector.multi_reduction <maximumf>, %42, %cst_22 [1] : vector<8x8xf32> to vector<8xf32>
    %44 = vector.shape_cast %43 : vector<8xf32> to vector<8x1xf32>
    %45 = vector.broadcast %44 : vector<8x1xf32> to vector<8x8xf32>
    %46 = arith.subf %42, %45 : vector<8x8xf32>
    %47 = math.exp %46 : vector<8x8xf32>
    %cst_23 = arith.constant dense<0.000000e+00> : vector<8xf32>
    %48 = vector.multi_reduction <add>, %47, %cst_23 [1] : vector<8x8xf32> to vector<8xf32>
    %49 = vector.shape_cast %48 : vector<8xf32> to vector<8x1xf32>
    %50 = tpu.reciprocal %49 {approx = true} : vector<8x1xf32> -> vector<8x1xf32>
    %51 = vector.broadcast %50 : vector<8x1xf32> to vector<8x8xf32>
    %52 = arith.mulf %47, %51 : vector<8x8xf32>
    %53 = arith.truncf %52 : vector<8x8xf32> to vector<8x8xbf16>
    %cst_24 = arith.constant dense<0.000000e+00> : vector<8x8xf32>
    %54 = tpu.matmul %53, %39, %cst_24 {dimension_numbers = #tpu.dot_dimension_numbers<[1], [0], [0], [1], [0, 0, 1, 1], [], []>} : vector<8x8xbf16>, vector<8x8xbf16>, vector<8x8xf32> -> vector<8x8xf32>
    %c0_25 = arith.constant 0 : index
    %c8 = arith.constant 8 : index
    %55 = vector.load %arg15[%c0_25, %c8] : memref<8x32xf32, #tpu.memory_space<vmem>>, vector<8x8xf32>
    tpu.vector_store %arg15[%c0_25, %c8], %54 {strides = array<i32>} : memref<8x32xf32, #tpu.memory_space<vmem>>, vector<8x8xf32>,
    %56 = vector.extract_strided_slice %7 {offsets = [0, 16], sizes = [8, 8], strides = [1, 1]} : vector<8x32xf32> to vector<8x8xf32>
    %57 = arith.truncf %56 : vector<8x8xf32> to vector<8x8xbf16>
    %58 = vector.extract_strided_slice %9 {offsets = [0, 16], sizes = [8, 8], strides = [1, 1]} : vector<8x32xf32> to vector<8x8xf32>
    %59 = arith.truncf %58 : vector<8x8xf32> to vector<8x8xbf16>
    %60 = vector.extract_strided_slice %11 {offsets = [0, 16], sizes = [8, 8], strides = [1, 1]} : vector<8x32xf32> to vector<8x8xf32>
    %61 = arith.truncf %60 : vector<8x8xf32> to vector<8x8xbf16>
    %cst_26 = arith.constant dense<0.000000e+00> : vector<8x8xf32>
    %62 = tpu.matmul %57, %59, %cst_26 {dimension_numbers = #tpu.dot_dimension_numbers<[1], [1], [0], [0], [0, 0, 1, 0], [], []>} : vector<8x8xbf16>, vector<8x8xbf16>, vector<8x8xf32> -> vector<8x8xf32>
    %cst_27 = arith.constant 0.353553385 : f32
    %63 = vector.broadcast %cst_27 : f32 to vector<8x8xf32>
    %64 = arith.mulf %62, %63 : vector<8x8xf32>
    %cst_28 = arith.constant dense<0xFF800000> : vector<8xf32>
    %65 = vector.multi_reduction <maximumf>, %64, %cst_28 [1] : vector<8x8xf32> to vector<8xf32>
    %66 = vector.shape_cast %65 : vector<8xf32> to vector<8x1xf32>
    %67 = vector.broadcast %66 : vector<8x1xf32> to vector<8x8xf32>
    %68 = arith.subf %64, %67 : vector<8x8xf32>
    %69 = math.exp %68 : vector<8x8xf32>
    %cst_29 = arith.constant dense<0.000000e+00> : vector<8xf32>
    %70 = vector.multi_reduction <add>, %69, %cst_29 [1] : vector<8x8xf32> to vector<8xf32>
    %71 = vector.shape_cast %70 : vector<8xf32> to vector<8x1xf32>
    %72 = tpu.reciprocal %71 {approx = true} : vector<8x1xf32> -> vector<8x1xf32>
    %73 = vector.broadcast %72 : vector<8x1xf32> to vector<8x8xf32>
    %74 = arith.mulf %69, %73 : vector<8x8xf32>
    %75 = arith.truncf %74 : vector<8x8xf32> to vector<8x8xbf16>
    %cst_30 = arith.constant dense<0.000000e+00> : vector<8x8xf32>
    %76 = tpu.matmul %75, %61, %cst_30 {dimension_numbers = #tpu.dot_dimension_numbers<[1], [0], [0], [1], [0, 0, 1, 1], [], []>} : vector<8x8xbf16>, vector<8x8xbf16>, vector<8x8xf32> -> vector<8x8xf32>
    %c0_31 = arith.constant 0 : index
    %c16 = arith.constant 16 : index
    %77 = vector.load %arg15[%c0_31, %c16] : memref<8x32xf32, #tpu.memory_space<vmem>>, vector<8x8xf32>
    tpu.vector_store %arg15[%c0_31, %c16], %76 {strides = array<i32>} : memref<8x32xf32, #tpu.memory_space<vmem>>, vector<8x8xf32>,
    %78 = vector.extract_strided_slice %7 {offsets = [0, 24], sizes = [8, 8], strides = [1, 1]} : vector<8x32xf32> to vector<8x8xf32>
    %79 = arith.truncf %78 : vector<8x8xf32> to vector<8x8xbf16>
    %80 = vector.extract_strided_slice %9 {offsets = [0, 24], sizes = [8, 8], strides = [1, 1]} : vector<8x32xf32> to vector<8x8xf32>
    %81 = arith.truncf %80 : vector<8x8xf32> to vector<8x8xbf16>
    %82 = vector.extract_strided_slice %11 {offsets = [0, 24], sizes = [8, 8], strides = [1, 1]} : vector<8x32xf32> to vector<8x8xf32>
    %83 = arith.truncf %82 : vector<8x8xf32> to vector<8x8xbf16>
    %cst_32 = arith.constant dense<0.000000e+00> : vector<8x8xf32>
    %84 = tpu.matmul %79, %81, %cst_32 {dimension_numbers = #tpu.dot_dimension_numbers<[1], [1], [0], [0], [0, 0, 1, 0], [], []>} : vector<8x8xbf16>, vector<8x8xbf16>, vector<8x8xf32> -> vector<8x8xf32>
    %cst_33 = arith.constant 0.353553385 : f32
    %85 = vector.broadcast %cst_33 : f32 to vector<8x8xf32>
    %86 = arith.mulf %84, %85 : vector<8x8xf32>
    %cst_34 = arith.constant dense<0xFF800000> : vector<8xf32>
    %87 = vector.multi_reduction <maximumf>, %86, %cst_34 [1] : vector<8x8xf32> to vector<8xf32>
    %88 = vector.shape_cast %87 : vector<8xf32> to vector<8x1xf32>
    %89 = vector.broadcast %88 : vector<8x1xf32> to vector<8x8xf32>
    %90 = arith.subf %86, %89 : vector<8x8xf32>
    %91 = math.exp %90 : vector<8x8xf32>
    %cst_35 = arith.constant dense<0.000000e+00> : vector<8xf32>
    %92 = vector.multi_reduction <add>, %91, %cst_35 [1] : vector<8x8xf32> to vector<8xf32>
    %93 = vector.shape_cast %92 : vector<8xf32> to vector<8x1xf32>
    %94 = tpu.reciprocal %93 {approx = true} : vector<8x1xf32> -> vector<8x1xf32>
    %95 = vector.broadcast %94 : vector<8x1xf32> to vector<8x8xf32>
    %96 = arith.mulf %91, %95 : vector<8x8xf32>
    %97 = arith.truncf %96 : vector<8x8xf32> to vector<8x8xbf16>
    %cst_36 = arith.constant dense<0.000000e+00> : vector<8x8xf32>
    %98 = tpu.matmul %97, %83, %cst_36 {dimension_numbers = #tpu.dot_dimension_numbers<[1], [0], [0], [1], [0, 0, 1, 1], [], []>} : vector<8x8xbf16>, vector<8x8xbf16>, vector<8x8xf32> -> vector<8x8xf32>
    %c0_37 = arith.constant 0 : index
    %c24 = arith.constant 24 : index
    %99 = vector.load %arg15[%c0_37, %c24] : memref<8x32xf32, #tpu.memory_space<vmem>>, vector<8x8xf32>
    tpu.vector_store %arg15[%c0_37, %c24], %98 {strides = array<i32>} : memref<8x32xf32, #tpu.memory_space<vmem>>, vector<8x8xf32>,
    %c0_38 = arith.constant 0 : index
    %c0_39 = arith.constant 0 : index
    %100 = vector.load %arg15[%c0_38, %c0_39] : memref<8x32xf32, #tpu.memory_space<vmem>>, vector<8x32xf32>
    %101 = arith.truncf %100 : vector<8x32xf32> to vector<8x32xbf16>
    %c0_40 = arith.constant 0 : index
    %c0_41 = arith.constant 0 : index
    %102 = vector.load %arg7[%c0_40, %c0_41] : memref<32x32xbf16, #tpu.memory_space<vmem>>, vector<32x32xbf16>
    %cst_42 = arith.constant dense<0.000000e+00> : vector<8x32xf32>
    %103 = tpu.matmul %101, %102, %cst_42 {dimension_numbers = #tpu.dot_dimension_numbers<[1], [0], [0], [1], [0, 0, 1, 1], [], []>} : vector<8x32xbf16>, vector<32x32xbf16>, vector<8x32xf32> -> vector<8x32xf32>
    %104 = arith.addf %1, %103 : vector<8x32xf32>
    %c0_43 = arith.constant 0 : index
    %c0_44 = arith.constant 0 : index
    %105 = vector.load %arg10[%c0_43, %c0_44] : memref<1x32xf32, #tpu.memory_space<vmem>>, vector<1x32xf32>
    %c0_45 = arith.constant 0 : index
    %c0_46 = arith.constant 0 : index
    %106 = vector.load %arg11[%c0_45, %c0_46] : memref<1x32xf32, #tpu.memory_space<vmem>>, vector<1x32xf32>
    %cst_47 = arith.constant dense<0.000000e+00> : vector<8xf32>
    %107 = vector.multi_reduction <add>, %104, %cst_47 [1] : vector<8x32xf32> to vector<8xf32>
    %108 = vector.shape_cast %107 : vector<8xf32> to vector<8x1xf32>
    %cst_48 = arith.constant 3.200000e+01 : f32
    %109 = vector.broadcast %cst_48 : f32 to vector<8x1xf32>
    %110 = arith.divf %108, %109 : vector<8x1xf32>
    %111 = vector.broadcast %110 : vector<8x1xf32> to vector<8x32xf32>
    %112 = arith.subf %104, %111 : vector<8x32xf32>
    %113 = arith.mulf %112, %112 : vector<8x32xf32>
    %cst_49 = arith.constant dense<0.000000e+00> : vector<8xf32>
    %114 = vector.multi_reduction <add>, %113, %cst_49 [1] : vector<8x32xf32> to vector<8xf32>
    %115 = vector.shape_cast %114 : vector<8xf32> to vector<8x1xf32>
    %cst_50 = arith.constant 3.200000e+01 : f32
    %116 = vector.broadcast %cst_50 : f32 to vector<8x1xf32>
    %117 = arith.divf %115, %116 : vector<8x1xf32>
    %118 = vector.broadcast %110 : vector<8x1xf32> to vector<8x32xf32>
    %119 = arith.subf %104, %118 : vector<8x32xf32>
    %cst_51 = arith.constant 9.99999974E-6 : f32
    %120 = vector.broadcast %cst_51 : f32 to vector<8x1xf32>
    %121 = arith.addf %117, %120 : vector<8x1xf32>
    %122 = math.rsqrt %121 : vector<8x1xf32>
    %123 = vector.broadcast %122 : vector<8x1xf32> to vector<8x32xf32>
    %124 = arith.mulf %119, %123 : vector<8x32xf32>
    %125 = vector.broadcast %105 : vector<1x32xf32> to vector<8x32xf32>
    %126 = arith.mulf %124, %125 : vector<8x32xf32>
    %127 = vector.broadcast %106 : vector<1x32xf32> to vector<8x32xf32>
    %128 = arith.addf %126, %127 : vector<8x32xf32>
    %129 = arith.truncf %128 : vector<8x32xf32> to vector<8x32xbf16>
    %c0_52 = arith.constant 0 : index
    %c0_53 = arith.constant 0 : index
    %130 = vector.load %arg8[%c0_52, %c0_53] : memref<32x64xbf16, #tpu.memory_space<vmem>>, vector<32x64xbf16>
    %cst_54 = arith.constant dense<0.000000e+00> : vector<8x64xf32>
    %131 = tpu.matmul %129, %130, %cst_54 {dimension_numbers = #tpu.dot_dimension_numbers<[1], [0], [0], [1], [0, 0, 1, 1], [], []>} : vector<8x32xbf16>, vector<32x64xbf16>, vector<8x64xf32> -> vector<8x64xf32>
    %cst_55 = arith.constant 0.000000e+00 : f32
    %132 = vector.broadcast %cst_55 : f32 to vector<8x64xf32>
    %133 = arith.maximumf %131, %132 : vector<8x64xf32>
    %134 = arith.truncf %133 : vector<8x64xf32> to vector<8x64xbf16>
    %c0_56 = arith.constant 0 : index
    %c0_57 = arith.constant 0 : index
    %135 = vector.load %arg9[%c0_56, %c0_57] : memref<64x32xbf16, #tpu.memory_space<vmem>>, vector<64x32xbf16>
    %cst_58 = arith.constant dense<0.000000e+00> : vector<8x32xf32>
    %136 = tpu.matmul %134, %135, %cst_58 {dimension_numbers = #tpu.dot_dimension_numbers<[1], [0], [0], [1], [0, 0, 1, 1], [], []>} : vector<8x64xbf16>, vector<64x32xbf16>, vector<8x32xf32> -> vector<8x32xf32>
    %137 = arith.addf %128, %136 : vector<8x32xf32>
    %c0_59 = arith.constant 0 : index
    %c0_60 = arith.constant 0 : index
    %138 = vector.load %arg12[%c0_59, %c0_60] : memref<1x32xf32, #tpu.memory_space<vmem>>, vector<1x32xf32>
    %c0_61 = arith.constant 0 : index
    %c0_62 = arith.constant 0 : index
    %139 = vector.load %arg13[%c0_61, %c0_62] : memref<1x32xf32, #tpu.memory_space<vmem>>, vector<1x32xf32>
    %cst_63 = arith.constant dense<0.000000e+00> : vector<8xf32>
    %140 = vector.multi_reduction <add>, %137, %cst_63 [1] : vector<8x32xf32> to vector<8xf32>
    %141 = vector.shape_cast %140 : vector<8xf32> to vector<8x1xf32>
    %cst_64 = arith.constant 3.200000e+01 : f32
    %142 = vector.broadcast %cst_64 : f32 to vector<8x1xf32>
    %143 = arith.divf %141, %142 : vector<8x1xf32>
    %144 = vector.broadcast %143 : vector<8x1xf32> to vector<8x32xf32>
    %145 = arith.subf %137, %144 : vector<8x32xf32>
    %146 = arith.mulf %145, %145 : vector<8x32xf32>
    %cst_65 = arith.constant dense<0.000000e+00> : vector<8xf32>
    %147 = vector.multi_reduction <add>, %146, %cst_65 [1] : vector<8x32xf32> to vector<8xf32>
    %148 = vector.shape_cast %147 : vector<8xf32> to vector<8x1xf32>
    %cst_66 = arith.constant 3.200000e+01 : f32
    %149 = vector.broadcast %cst_66 : f32 to vector<8x1xf32>
    %150 = arith.divf %148, %149 : vector<8x1xf32>
    %151 = vector.broadcast %143 : vector<8x1xf32> to vector<8x32xf32>
    %152 = arith.subf %137, %151 : vector<8x32xf32>
    %cst_67 = arith.constant 9.99999974E-6 : f32
    %153 = vector.broadcast %cst_67 : f32 to vector<8x1xf32>
    %154 = arith.addf %150, %153 : vector<8x1xf32>
    %155 = math.rsqrt %154 : vector<8x1xf32>
    %156 = vector.broadcast %155 : vector<8x1xf32> to vector<8x32xf32>
    %157 = arith.mulf %152, %156 : vector<8x32xf32>
    %158 = vector.broadcast %138 : vector<1x32xf32> to vector<8x32xf32>
    %159 = arith.mulf %157, %158 : vector<8x32xf32>
    %160 = vector.broadcast %139 : vector<1x32xf32> to vector<8x32xf32>
    %161 = arith.addf %159, %160 : vector<8x32xf32>
    %c0_68 = arith.constant 0 : index
    %c0_69 = arith.constant 0 : index
    %c0_70 = arith.constant 0 : index
    %162 = vector.load %arg14[%c0_68, %c0_69, %c0_70] : memref<1x8x32xf32, #tpu.memory_space<vmem>>, vector<1x8x32xf32>
    %163 = vector.shape_cast %162 : vector<1x8x32xf32> to vector<8x32xf32>
    %164 = vector.shape_cast %161 : vector<8x32xf32> to vector<1x8x32xf32>
    tpu.vector_store %arg14[%c0_68, %c0_69, %c0_70], %164 {strides = array<i32>} : memref<1x8x32xf32, #tpu.memory_space<vmem>>, vector<1x8x32xf32>,
    return
  }
  func.func @transform_0(%arg0: i32, %arg1: i32) -> (i32, i32, i32) {
    %c0_i32 = arith.constant 0 : i32
    %c0_i32_0 = arith.constant 0 : i32
    return %arg0, %arg1, %c0_i32 : i32, i32, i32
  }
  func.func @transform_1(%arg0: i32, %arg1: i32) -> (i32, i32, i32) {
    %c0_i32 = arith.constant 0 : i32
    %c0_i32_0 = arith.constant 0 : i32
    %c0_i32_1 = arith.constant 0 : i32
    return %arg0, %c0_i32, %c0_i32_0 : i32, i32, i32
  }
  func.func @transform_2(%arg0: i32, %arg1: i32) -> (i32, i32) {
    %c0_i32 = arith.constant 0 : i32
    %c0_i32_0 = arith.constant 0 : i32
    %c0_i32_1 = arith.constant 0 : i32
    return %c0_i32, %c0_i32_0 : i32, i32
  }
  func.func @transform_3(%arg0: i32, %arg1: i32) -> (i32, i32) {
    %c0_i32 = arith.constant 0 : i32
    %c0_i32_0 = arith.constant 0 : i32
    %c0_i32_1 = arith.constant 0 : i32
    return %c0_i32, %c0_i32_0 : i32, i32
  }
  func.func @transform_4(%arg0: i32, %arg1: i32) -> (i32, i32) {
    %c0_i32 = arith.constant 0 : i32
    %c0_i32_0 = arith.constant 0 : i32
    %c0_i32_1 = arith.constant 0 : i32
    return %c0_i32, %c0_i32_0 : i32, i32
  }
  func.func @transform_5(%arg0: i32, %arg1: i32) -> (i32, i32) {
    %c0_i32 = arith.constant 0 : i32
    %c0_i32_0 = arith.constant 0 : i32
    %c0_i32_1 = arith.constant 0 : i32
    return %c0_i32, %c0_i32_0 : i32, i32
  }
  func.func @transform_6(%arg0: i32, %arg1: i32) -> (i32, i32) {
    %c0_i32 = arith.constant 0 : i32
    %c0_i32_0 = arith.constant 0 : i32
    %c0_i32_1 = arith.constant 0 : i32
    return %c0_i32, %c0_i32_0 : i32, i32
  }
  func.func @transform_7(%arg0: i32, %arg1: i32) -> (i32, i32) {
    %c0_i32 = arith.constant 0 : i32
    %c0_i32_0 = arith.constant 0 : i32
    %c0_i32_1 = arith.constant 0 : i32
    return %c0_i32, %c0_i32_0 : i32, i32
  }
  func.func @transform_8(%arg0: i32, %arg1: i32) -> (i32, i32) {
    %c0_i32 = arith.constant 0 : i32
    %c0_i32_0 = arith.constant 0 : i32
    %c0_i32_1 = arith.constant 0 : i32
    return %c0_i32, %c0_i32_0 : i32, i32
  }
  func.func @transform_9(%arg0: i32, %arg1: i32) -> (i32, i32) {
    %c0_i32 = arith.constant 0 : i32
    %c0_i32_0 = arith.constant 0 : i32
    %c0_i32_1 = arith.constant 0 : i32
    return %c0_i32, %c0_i32_0 : i32, i32
  }
  func.func @transform_10(%arg0: i32, %arg1: i32) -> (i32, i32) {
    %c0_i32 = arith.constant 0 : i32
    %c0_i32_0 = arith.constant 0 : i32
    %c0_i32_1 = arith.constant 0 : i32
    return %c0_i32, %c0_i32_0 : i32, i32
  }
  func.func @transform_11(%arg0: i32, %arg1: i32) -> (i32, i32) {
    %c0_i32 = arith.constant 0 : i32
    %c0_i32_0 = arith.constant 0 : i32
    %c0_i32_1 = arith.constant 0 : i32
    return %c0_i32, %c0_i32_0 : i32, i32
  }
  func.func @transform_12(%arg0: i32, %arg1: i32) -> (i32, i32, i32) {
    %c0_i32 = arith.constant 0 : i32
    %c0_i32_0 = arith.constant 0 : i32
    return %arg0, %arg1, %c0_i32 : i32, i32, i32
  }
}

</mosaic_0001>

<llo_original>
// kernel: tpu_custom_call.1
$region0: #{tpu_custom_call.1}
  #allocation0 [shape = 'u32[]', space=smem, size = 0x4, offset = 0x4, fixed_abs, tag = 'smem constant byte address 0x4 - core index']
  #allocation1 [shape = 'u32[144,128]{1,0:T(1,128)}', space=vmem, size = 0x12000, scoped, tag = 'internal scratch']
  #allocation2 [shape = 'f32[8,32]{1,0:T(8,128)}', space=vmem, size = 0x1000, scoped, tag = 'scratch operand']
  %s0 = inlined_call_operand.vmem [shape: f32[2,8,32], index: 0, kind: input, shape index: {}]
  %s1 = inlined_call_operand.vmem [shape: f32[2,8,32], index: 1, kind: input, shape index: {}]
  %s2 = inlined_call_operand.vmem [shape: bf16[32,32], index: 2, kind: input, shape index: {}]
  %s3 = inlined_call_operand.hbm [shape: bf16[32,32], index: 3, kind: input, shape index: {}]
  %s4 = inlined_call_operand.hbm [shape: bf16[32,32], index: 4, kind: input, shape index: {}]
  %s5 = inlined_call_operand.hbm [shape: bf16[32,32], index: 5, kind: input, shape index: {}]
  %s6 = inlined_call_operand.hbm [shape: bf16[32,64], index: 6, kind: input, shape index: {}]
  %s7 = inlined_call_operand.vmem [shape: bf16[64,32], index: 7, kind: input, shape index: {}]
  %s8 = inlined_call_operand.vmem [shape: f32[1,32], index: 8, kind: input, shape index: {}]
  %s9 = inlined_call_operand.vmem [shape: f32[1,32], index: 9, kind: input, shape index: {}]
  %s10 = inlined_call_operand.vmem [shape: f32[1,32], index: 10, kind: input, shape index: {}]
  %s11 = inlined_call_operand.vmem [shape: f32[1,32], index: 11, kind: input, shape index: {}]
  %s12 = inlined_call_operand.hbm [shape: f32[2,8,32], index: 12, kind: output, shape index: {}]
  %s13 = sld [smem:[#allocation0]]
  $region97: #{tpu_custom_call.1} parent=0
    _
  %s15 = ssub.s32 1, %s13
  %s16 = scalar_select 0, %s15, %s13
  $region1: #{tpu_custom_call.1} parent=0
    #allocation3 [shape = 'u8[8192]{0}', space=vmem, size = 0x2000, scoped, tag = 'input window, operand 3, single buffered']
    #allocation4 [shape = 's32[2]{0}', space=sflag, size = 0x8, scoped, tag = 'scoped memory for tpu_custom_call.1']
    #allocation5 [shape = 's32[2]{0}', space=sflag, size = 0x8, scoped, tag = 'scoped memory for tpu_custom_call.1']
    #allocation6 [shape = 'u8[8192]{0}', space=vmem, size = 0x2000, scoped, tag = 'input window, operand 4, single buffered']
    #allocation7 [shape = 's32[1]{0}', space=sflag, size = 0x4, scoped, tag = 'scoped memory for tpu_custom_call.1']
    #allocation8 [shape = 'u8[8192]{0}', space=vmem, size = 0x2000, scoped, tag = 'input window, operand 5, single buffered']
    #allocation9 [shape = 'u8[8192]{0}', space=vmem, size = 0x2000, scoped, tag = 'input window, operand 6, single buffered']
    #allocation10 [shape = 's32[1]{0}', space=sflag, size = 0x4, scoped, tag = 'scoped memory for tpu_custom_call.1']
    #allocation11 [shape = 'u8[8192]{0}', space=vmem, size = 0x2000, scoped, tag = 'output window, operand 0']
    %17 = vsyncpa [#allocation4], 0
    %18 = vsyncpa [#allocation7], 0
    %19 = vsyncpa [#allocation10], 0
    %20 = vsyncpa [#allocation5], 0
    %s21 = scalar_lea.sflag [#allocation5], 1
    %22 = vsyncpa %s21, 0
    loop: start=0, step=1, limit=4
    $region2: #{tpu_custom_call.1} parent=1 // loop_pre_header
      _
    $region3: #{tpu_custom_call.1} parent=1 // loop_header
      %s24 = sphi 0, %s28
      %p25 = scmp.ge.s32.totalorder %s24, 4
      %s31 = sphi 0, %s43
      %s32 = sphi 0, %s39
      %s33 = sphi 0, %s31
      %s34 = sphi 0, %s32
      %s35 = sphi 0, %s33
      %s36 = sphi 0, %s34
      %s48 = sphi 0, %s50
      %s51 = sphi 0, %s48
      %s52 = sphi 0, %s51
      %s68 = sphi 0, %s52
      %s74 = sphi 0, %s76
      %s77 = sphi 0, %s74
      %s78 = sphi 0, %s77
      %s94 = sphi 0, %s78
      %s98 = sphi 0, %s98
      %s100 = sphi 0, %s98
      %s101 = sphi 0, %s100
      %s115 = sphi 0, %s101
      %s119 = sphi 0, %s119
      %s121 = sphi 0, %s119
      %s122 = sphi 0, %s121
      %s136 = sphi 0, %s122
      %s140 = sphi 0, %s140
      %s142 = sphi 0, %s140
      %s143 = sphi 0, %s142
      %s157 = sphi 0, %s143
      %s161 = sphi 0, %s161
      %s163 = sphi 0, %s161
      %s164 = sphi 0, %s163
      %s178 = sphi 0, %s164
      %s182 = sphi 0, %s182
      %s184 = sphi 0, %s182
      %s185 = sphi 0, %s184
      %s199 = sphi 0, %s185
      %s203 = sphi 0, %s203
      %s205 = sphi 0, %s203
      %s206 = sphi 0, %s205
      %s220 = sphi 0, %s206
      %s224 = sphi 0, %s224
      %s226 = sphi 0, %s224
      %s227 = sphi 0, %s226
      %s241 = sphi 0, %s227
      %s245 = sphi 0, %s245
      %s247 = sphi 0, %s245
      %s248 = sphi 0, %s247
      %s262 = sphi 0, %s248
      %s266 = sphi 0, %s266
      %s268 = sphi 0, %s266
      %s269 = sphi 0, %s268
      %s283 = sphi 0, %s269
      %s287 = sphi 0, %s287
      %s289 = sphi 0, %s287
      %s290 = sphi 0, %s289
      %s304 = sphi 0, %s290
      %s312 = sphi 0, %s314
      %s315 = sphi 0, %s312
      %s316 = sphi 0, %s315
      %s332 = sphi 0, %s316
    $region4: #{tpu_custom_call.1} parent=1 // loop_header_branch
      %27 = sbr.rel (%p25) target = $region8
    $region5: #{tpu_custom_call.1} parent=1 // loop_body
      %s29 = ssub.s32 %s24, 1
      %s30 = ssub.s32 %s24, 2
      %s37 = sadd.s32 1, %s32
      %p38 = scmp.ge.s32.totalorder %s37, 1
      %s39 = scalar_select %p38, 0, %s37
      %s40 = sadd.s32 1, %s31
      %s41 = scalar_select %p38, %s40, %s31
      %p42 = scmp.ge.s32.totalorder %s41, 2
      %s43 = scalar_select %p42, 0, %s41
      %s44 = ssub.s32 %s31, %s43
      %s45 = ssub.s32 %s32, %s39
      %s46 = sor.u32 %s44, %s45
      %p47 = scmp.eq.s32.totalorder %s46, 0
      %s49 = sadd.s32 %s48, 1
      %s50 = scalar_select %p47, %s48, %s49
      %p53 = pneg %p47
      %p54 = scmp.eq.s32.totalorder %s24, 1
      %p55 = por %p53, %p54
      %p56 = scmp.ne.s32.totalorder %s48, %s51
      %p57 = scmp.eq.s32.totalorder %s24, 0
      %p58 = por %p56, %p57
      %p59 = scmp.ne.s32.totalorder %s48, %s51
      %p60 = scmp.eq.s32.totalorder %s29, 1
      %p61 = por %p59, %p60
      %p62 = scmp.ne.s32.totalorder %s51, %s52
      %p63 = scmp.eq.s32.totalorder %s29, 0
      %p64 = por %p62, %p63
      %p65 = scmp.ne.s32.totalorder %s51, %s52
      %p66 = scmp.eq.s32.totalorder %s30, 1
      %p67 = por %p65, %p66
      %p69 = scmp.ne.s32.totalorder %s52, %s68
      %p70 = scmp.eq.s32.totalorder %s30, 0
      %p71 = por %p69, %p70
      %s72 = ssub.s32 %s31, %s43
      %p73 = scmp.eq.s32.totalorder %s72, 0
      %s75 = sadd.s32 %s74, 1
      %s76 = scalar_select %p73, %s74, %s75
      %p79 = pneg %p73
      %p80 = scmp.eq.s32.totalorder %s24, 1
      %p81 = por %p79, %p80
      %p82 = scmp.ne.s32.totalorder %s74, %s77
      %p83 = scmp.eq.s32.totalorder %s24, 0
      %p84 = por %p82, %p83
      %p85 = scmp.ne.s32.totalorder %s74, %s77
      %p86 = scmp.eq.s32.totalorder %s29, 1
      %p87 = por %p85, %p86
      %p88 = scmp.ne.s32.totalorder %s77, %s78
      %p89 = scmp.eq.s32.totalorder %s29, 0
      %p90 = por %p88, %p89
      %p91 = scmp.ne.s32.totalorder %s77, %s78
      %p92 = scmp.eq.s32.totalorder %s30, 1
      %p93 = por %p91, %p92
      %p95 = scmp.ne.s32.totalorder %s78, %s94
      %p96 = scmp.eq.s32.totalorder %s30, 0
      %p97 = por %p95, %p96
      %s99 = sadd.s32 %s98, 1
      %p102 = scmp.eq.s32.totalorder %s24, 1
      %p103 = scmp.ne.s32.totalorder %s98, %s100
      %p104 = scmp.eq.s32.totalorder %s24, 0
      %p105 = por %p103, %p104
      %p106 = scmp.ne.s32.totalorder %s98, %s100
      %p107 = scmp.eq.s32.totalorder %s29, 1
      %p108 = por %p106, %p107
      %p109 = scmp.ne.s32.totalorder %s100, %s101
      %p110 = scmp.eq.s32.totalorder %s29, 0
      %p111 = por %p109, %p110
      %p112 = scmp.ne.s32.totalorder %s100, %s101
      %p113 = scmp.eq.s32.totalorder %s30, 1
      %p114 = por %p112, %p113
      %p116 = scmp.ne.s32.totalorder %s101, %s115
      %p117 = scmp.eq.s32.totalorder %s30, 0
      %p118 = por %p116, %p117
      %s120 = sadd.s32 %s119, 1
      %p123 = scmp.eq.s32.totalorder %s24, 1
      %p124 = scmp.ne.s32.totalorder %s119, %s121
      %p125 = scmp.eq.s32.totalorder %s24, 0
      %p126 = por %p124, %p125
      %p127 = scmp.ne.s32.totalorder %s119, %s121
      %p128 = scmp.eq.s32.totalorder %s29, 1
      %p129 = por %p127, %p128
      %p130 = scmp.ne.s32.totalorder %s121, %s122
      %p131 = scmp.eq.s32.totalorder %s29, 0
      %p132 = por %p130, %p131
      %p133 = scmp.ne.s32.totalorder %s121, %s122
      %p134 = scmp.eq.s32.totalorder %s30, 1
      %p135 = por %p133, %p134
      %p137 = scmp.ne.s32.totalorder %s122, %s136
      %p138 = scmp.eq.s32.totalorder %s30, 0
      %p139 = por %p137, %p138
      %s141 = sadd.s32 %s140, 1
      %p144 = scmp.eq.s32.totalorder %s24, 1
      %p145 = scmp.ne.s32.totalorder %s140, %s142
      %p146 = scmp.eq.s32.totalorder %s24, 0
      %p147 = por %p145, %p146
      %p148 = scmp.ne.s32.totalorder %s140, %s142
      %p149 = scmp.eq.s32.totalorder %s29, 1
      %p150 = por %p148, %p149
      %p151 = scmp.ne.s32.totalorder %s142, %s143
      %p152 = scmp.eq.s32.totalorder %s29, 0
      %p153 = por %p151, %p152
      %p154 = scmp.ne.s32.totalorder %s142, %s143
      %p155 = scmp.eq.s32.totalorder %s30, 1
      %p156 = por %p154, %p155
      %p158 = scmp.ne.s32.totalorder %s143, %s157
      %p159 = scmp.eq.s32.totalorder %s30, 0
      %p160 = por %p158, %p159
      %s162 = sadd.s32 %s161, 1
      %p165 = scmp.eq.s32.totalorder %s24, 1
      %p166 = scmp.ne.s32.totalorder %s161, %s163
      %p167 = scmp.eq.s32.totalorder %s24, 0
      %p168 = por %p166, %p167
      %p169 = scmp.ne.s32.totalorder %s161, %s163
      %p170 = scmp.eq.s32.totalorder %s29, 1
      %p171 = por %p169, %p170
      %p172 = scmp.ne.s32.totalorder %s163, %s164
      %p173 = scmp.eq.s32.totalorder %s29, 0
      %p174 = por %p172, %p173
      %p175 = scmp.ne.s32.totalorder %s163, %s164
      %p176 = scmp.eq.s32.totalorder %s30, 1
      %p177 = por %p175, %p176
      %p179 = scmp.ne.s32.totalorder %s164, %s178
      %p180 = scmp.eq.s32.totalorder %s30, 0
      %p181 = por %p179, %p180
      %s183 = sadd.s32 %s182, 1
      %p186 = scmp.eq.s32.totalorder %s24, 1
      %p187 = scmp.ne.s32.totalorder %s182, %s184
      %p188 = scmp.eq.s32.totalorder %s24, 0
      %p189 = por %p187, %p188
      %p190 = scmp.ne.s32.totalorder %s182, %s184
      %p191 = scmp.eq.s32.totalorder %s29, 1
      %p192 = por %p190, %p191
      %p193 = scmp.ne.s32.totalorder %s184, %s185
      %p194 = scmp.eq.s32.totalorder %s29, 0
      %p195 = por %p193, %p194
      %p196 = scmp.ne.s32.totalorder %s184, %s185
      %p197 = scmp.eq.s32.totalorder %s30, 1
      %p198 = por %p196, %p197
      %p200 = scmp.ne.s32.totalorder %s185, %s199
      %p201 = scmp.eq.s32.totalorder %s30, 0
      %p202 = por %p200, %p201
      %s204 = sadd.s32 %s203, 1
      %p207 = scmp.eq.s32.totalorder %s24, 1
      %p208 = scmp.ne.s32.totalorder %s203, %s205
      %p209 = scmp.eq.s32.totalorder %s24, 0
      %p210 = por %p208, %p209
      %p211 = scmp.ne.s32.totalorder %s203, %s205
      %p212 = scmp.eq.s32.totalorder %s29, 1
      %p213 = por %p211, %p212
      %p214 = scmp.ne.s32.totalorder %s205, %s206
      %p215 = scmp.eq.s32.totalorder %s29, 0
      %p216 = por %p214, %p215
      %p217 = scmp.ne.s32.totalorder %s205, %s206
      %p218 = scmp.eq.s32.totalorder %s30, 1
      %p219 = por %p217, %p218
      %p221 = scmp.ne.s32.totalorder %s206, %s220
      %p222 = scmp.eq.s32.totalorder %s30, 0
      %p223 = por %p221, %p222
      %s225 = sadd.s32 %s224, 1
      %p228 = scmp.eq.s32.totalorder %s24, 1
      %p229 = scmp.ne.s32.totalorder %s224, %s226
      %p230 = scmp.eq.s32.totalorder %s24, 0
      %p231 = por %p229, %p230
      %p232 = scmp.ne.s32.totalorder %s224, %s226
      %p233 = scmp.eq.s32.totalorder %s29, 1
      %p234 = por %p232, %p233
      %p235 = scmp.ne.s32.totalorder %s226, %s227
      %p236 = scmp.eq.s32.totalorder %s29, 0
      %p237 = por %p235, %p236
      %p238 = scmp.ne.s32.totalorder %s226, %s227
      %p239 = scmp.eq.s32.totalorder %s30, 1
      %p240 = por %p238, %p239
      %p242 = scmp.ne.s32.totalorder %s227, %s241
      %p243 = scmp.eq.s32.totalorder %s30, 0
      %p244 = por %p242, %p243
      %s246 = sadd.s32 %s245, 1
      %p249 = scmp.eq.s32.totalorder %s24, 1
      %p250 = scmp.ne.s32.totalorder %s245, %s247
      %p251 = scmp.eq.s32.totalorder %s24, 0
      %p252 = por %p250, %p251
      %p253 = scmp.ne.s32.totalorder %s245, %s247
      %p254 = scmp.eq.s32.totalorder %s29, 1
      %p255 = por %p253, %p254
      %p256 = scmp.ne.s32.totalorder %s247, %s248
      %p257 = scmp.eq.s32.totalorder %s29, 0
      %p258 = por %p256, %p257
      %p259 = scmp.ne.s32.totalorder %s247, %s248
      %p260 = scmp.eq.s32.totalorder %s30, 1
      %p261 = por %p259, %p260
      %p263 = scmp.ne.s32.totalorder %s248, %s262
      %p264 = scmp.eq.s32.totalorder %s30, 0
      %p265 = por %p263, %p264
      %s267 = sadd.s32 %s266, 1
      %p270 = scmp.eq.s32.totalorder %s24, 1
      %p271 = scmp.ne.s32.totalorder %s266, %s268
      %p272 = scmp.eq.s32.totalorder %s24, 0
      %p273 = por %p271, %p272
      %p274 = scmp.ne.s32.totalorder %s266, %s268
      %p275 = scmp.eq.s32.totalorder %s29, 1
      %p276 = por %p274, %p275
      %p277 = scmp.ne.s32.totalorder %s268, %s269
      %p278 = scmp.eq.s32.totalorder %s29, 0
      %p279 = por %p277, %p278
      %p280 = scmp.ne.s32.totalorder %s268, %s269
      %p281 = scmp.eq.s32.totalorder %s30, 1
      %p282 = por %p280, %p281
      %p284 = scmp.ne.s32.totalorder %s269, %s283
      %p285 = scmp.eq.s32.totalorder %s30, 0
      %p286 = por %p284, %p285
      %s288 = sadd.s32 %s287, 1
      %p291 = scmp.eq.s32.totalorder %s24, 1
      %p292 = scmp.ne.s32.totalorder %s287, %s289
      %p293 = scmp.eq.s32.totalorder %s24, 0
      %p294 = por %p292, %p293
      %p295 = scmp.ne.s32.totalorder %s287, %s289
      %p296 = scmp.eq.s32.totalorder %s29, 1
      %p297 = por %p295, %p296
      %p298 = scmp.ne.s32.totalorder %s289, %s290
      %p299 = scmp.eq.s32.totalorder %s29, 0
      %p300 = por %p298, %p299
      %p301 = scmp.ne.s32.totalorder %s289, %s290
      %p302 = scmp.eq.s32.totalorder %s30, 1
      %p303 = por %p301, %p302
      %p305 = scmp.ne.s32.totalorder %s290, %s304
      %p306 = scmp.eq.s32.totalorder %s30, 0
      %p307 = por %p305, %p306
      %s308 = ssub.s32 %s31, %s43
      %s309 = ssub.s32 %s32, %s39
      %s310 = sor.u32 %s308, %s309
      %p311 = scmp.eq.s32.totalorder %s310, 0
      %s313 = sadd.s32 %s312, 1
      %s314 = scalar_select %p311, %s312, %s313
      %p317 = pneg %p311
      %p318 = scmp.eq.s32.totalorder %s24, 1
      %p319 = por %p317, %p318
      %p320 = scmp.ne.s32.totalorder %s312, %s315
      %p321 = scmp.eq.s32.totalorder %s24, 0
      %p322 = por %p320, %p321
      %p323 = scmp.ne.s32.totalorder %s312, %s315
      %p324 = scmp.eq.s32.totalorder %s29, 1
      %p325 = por %p323, %p324
      %p326 = scmp.ne.s32.totalorder %s315, %s316
      %p327 = scmp.eq.s32.totalorder %s29, 0
      %p328 = por %p326, %p327
      %p329 = scmp.ne.s32.totalorder %s315, %s316
      %p330 = scmp.eq.s32.totalorder %s30, 1
      %p331 = por %p329, %p330
      %p333 = scmp.ne.s32.totalorder %s316, %s332
      %p334 = scmp.eq.s32.totalorder %s30, 0
      %p335 = por %p333, %p334
      %p336 = scmp.le.s32.totalorder 1, %s24
      %p337 = scmp.lt.s32.totalorder %s24, 3
      %p338 = pnand %p336, %p337
      %p339 = pneg %p338
      // Predicated region
      $region9: #{tpu_custom_call.1} parent=5 // pred_check
        _
      $region10: #{tpu_custom_call.1} parent=5 // pred_check_branch
        %341 = sbr.rel (%p338) target = $region12
      $region11: #{tpu_custom_call.1} parent=5 // pred_region
        %s342 = ssub.s32 %s24, 1
        // Predicated region
        $region13: #{tpu_custom_call.1} parent=11 // pred_check
          %p343 = pneg %p111
        $region14: #{tpu_custom_call.1} parent=11 // pred_check_branch
          %345 = sbr.rel (%p343) target = $region16
        $region15: #{tpu_custom_call.1} parent=11 // pred_region
          _
        $region16: #{tpu_custom_call.1} parent=11 // pred_fallthru
          _
        // Predicated region
        $region17: #{tpu_custom_call.1} parent=11 // pred_check
          %p346 = pneg %p132
        $region18: #{tpu_custom_call.1} parent=11 // pred_check_branch
          %348 = sbr.rel (%p346) target = $region20
        $region19: #{tpu_custom_call.1} parent=11 // pred_region
          %s350 = ssub.s32 256, 256
          %351 = vsyncadd [#allocation4], %s350
          %s352 = sshll.u32 [#allocation3], 4
          %s353 = int_to_ptr.vmem [resolvable:$true] %s352
          %358 = dma.hbm_to_vmem [thread:$0]  %s3, 256, %s353, [#allocation4], 64, 64, 4
        $region20: #{tpu_custom_call.1} parent=11 // pred_fallthru
          _
        // Predicated region
        $region21: #{tpu_custom_call.1} parent=11 // pred_check
          %p359 = pneg %p153
        $region22: #{tpu_custom_call.1} parent=11 // pred_check_branch
          %361 = sbr.rel (%p359) target = $region24
        $region23: #{tpu_custom_call.1} parent=11 // pred_region
          %s363 = ssub.s32 256, 256
          %364 = vsyncadd [#allocation7], %s363
          %s365 = sshll.u32 [#allocation6], 4
          %s366 = int_to_ptr.vmem [resolvable:$true] %s365
          %371 = dma.hbm_to_vmem [thread:$0]  %s4, 256, %s366, [#allocation7], 64, 64, 4
        $region24: #{tpu_custom_call.1} parent=11 // pred_fallthru
          _
        // Predicated region
        $region25: #{tpu_custom_call.1} parent=11 // pred_check
          %p372 = pneg %p174
        $region26: #{tpu_custom_call.1} parent=11 // pred_check_branch
          %374 = sbr.rel (%p372) target = $region28
        $region27: #{tpu_custom_call.1} parent=11 // pred_region
          %s376 = ssub.s32 256, 256
          %377 = vsyncadd [#allocation7], %s376
          %s378 = sshll.u32 [#allocation8], 4
          %s379 = int_to_ptr.vmem [resolvable:$true] %s378
          %384 = dma.hbm_to_vmem [thread:$0]  %s5, 256, %s379, [#allocation7], 64, 64, 4
        $region28: #{tpu_custom_call.1} parent=11 // pred_fallthru
          _
        // Predicated region
        $region29: #{tpu_custom_call.1} parent=11 // pred_check
          %p385 = pneg %p195
        $region30: #{tpu_custom_call.1} parent=11 // pred_check_branch
          %387 = sbr.rel (%p385) target = $region32
        $region31: #{tpu_custom_call.1} parent=11 // pred_region
          %s389 = ssub.s32 256, 256
          %390 = vsyncadd [#allocation10], %s389
          %s391 = sshll.u32 [#allocation9], 4
          %s392 = int_to_ptr.vmem [resolvable:$true] %s391
          %397 = dma.hbm_to_vmem [thread:$0]  %s6, 256, %s392, [#allocation10], 64, 64, 4
        $region32: #{tpu_custom_call.1} parent=11 // pred_fallthru
          _
        // Predicated region
        $region33: #{tpu_custom_call.1} parent=11 // pred_check
          %p398 = pneg %p216
        $region34: #{tpu_custom_call.1} parent=11 // pred_check_branch
          %400 = sbr.rel (%p398) target = $region36
        $region35: #{tpu_custom_call.1} parent=11 // pred_region
          _
        $region36: #{tpu_custom_call.1} parent=11 // pred_fallthru
          _
        // Predicated region
        $region37: #{tpu_custom_call.1} parent=11 // pred_check
          %p401 = pneg %p237
        $region38: #{tpu_custom_call.1} parent=11 // pred_check_branch
          %403 = sbr.rel (%p401) target = $region40
        $region39: #{tpu_custom_call.1} parent=11 // pred_region
          _
        $region40: #{tpu_custom_call.1} parent=11 // pred_fallthru
          _
        // Predicated region
        $region41: #{tpu_custom_call.1} parent=11 // pred_check
          %p404 = pneg %p258
        $region42: #{tpu_custom_call.1} parent=11 // pred_check_branch
          %406 = sbr.rel (%p404) target = $region44
        $region43: #{tpu_custom_call.1} parent=11 // pred_region
          _
        $region44: #{tpu_custom_call.1} parent=11 // pred_fallthru
          _
        // Predicated region
        $region45: #{tpu_custom_call.1} parent=11 // pred_check
          %p407 = pneg %p279
        $region46: #{tpu_custom_call.1} parent=11 // pred_check_branch
          %409 = sbr.rel (%p407) target = $region48
        $region47: #{tpu_custom_call.1} parent=11 // pred_region
          _
        $region48: #{tpu_custom_call.1} parent=11 // pred_fallthru
          _
        // Predicated region
        $region49: #{tpu_custom_call.1} parent=11 // pred_check
          %p410 = pneg %p300
        $region50: #{tpu_custom_call.1} parent=11 // pred_check_branch
          %412 = sbr.rel (%p410) target = $region52
        $region51: #{tpu_custom_call.1} parent=11 // pred_region
          _
        $region52: #{tpu_custom_call.1} parent=11 // pred_fallthru
          _
      $region12: #{tpu_custom_call.1} parent=5 // pred_fallthru
        _
      %p413 = scmp.lt.s32.totalorder %s24, 2
      // Predicated region
      $region53: #{tpu_custom_call.1} parent=5 // pred_check
        %p414 = pneg %p413
      $region54: #{tpu_custom_call.1} parent=5 // pred_check_branch
        %416 = sbr.rel (%p414) target = $region56
      $region55: #{tpu_custom_call.1} parent=5 // pred_region
        // Predicated region
        $region57: #{tpu_custom_call.1} parent=55 // pred_check
          %p417 = pneg %p58
        $region58: #{tpu_custom_call.1} parent=55 // pred_check_branch
          %419 = sbr.rel (%p417) target = $region60
        $region59: #{tpu_custom_call.1} parent=55 // pred_region
          %p420 = scmp.lt.s32.totalorder %s31, 1
          %s421 = scalar_select %p420, %s31, 1
          %p422 = scmp.lt.s32.totalorder %s32, 0
          %s423 = scalar_select %p422, %s32, 0
          %s424 = sadd.s32 %s423, %s421
          %s425 = smul.addr %s424, 8
          %s426 = scalar_lea.vmem %s0, %s425
        $region60: #{tpu_custom_call.1} parent=55 // pred_fallthru
          _
        // Predicated region
        $region61: #{tpu_custom_call.1} parent=55 // pred_check
          %p427 = pneg %p84
        $region62: #{tpu_custom_call.1} parent=55 // pred_check_branch
          %429 = sbr.rel (%p427) target = $region64
        $region63: #{tpu_custom_call.1} parent=55 // pred_region
          %p430 = scmp.lt.s32.totalorder %s31, 1
          %s431 = scalar_select %p430, %s31, 1
          %s432 = smul.addr %s431, 8
          %s433 = scalar_lea.vmem %s1, %s432
        $region64: #{tpu_custom_call.1} parent=55 // pred_fallthru
          _
      $region56: #{tpu_custom_call.1} parent=5 // pred_fallthru
        _
      %p434 = scmp.le.s32.totalorder 1, %s24
      %p435 = scmp.lt.s32.totalorder %s24, 3
      %p436 = pnand %p434, %p435
      %p437 = pneg %p436
      // Predicated region
      $region65: #{tpu_custom_call.1} parent=5 // pred_check
        _
      $region66: #{tpu_custom_call.1} parent=5 // pred_check_branch
        %439 = sbr.rel (%p436) target = $region68
      $region67: #{tpu_custom_call.1} parent=5 // pred_region
        %s440 = ssub.s32 %s24, 1
        // Predicated region
        $region69: #{tpu_custom_call.1} parent=67 // pred_check
          %p441 = pneg %p132
        $region70: #{tpu_custom_call.1} parent=67 // pred_check_branch
          %443 = sbr.rel (%p441) target = $region72
        $region71: #{tpu_custom_call.1} parent=67 // pred_region
          %444 = dma.done [#allocation4], 256
        $region72: #{tpu_custom_call.1} parent=67 // pred_fallthru
          _
        // Predicated region
        $region73: #{tpu_custom_call.1} parent=67 // pred_check
          %p445 = pneg %p153
        $region74: #{tpu_custom_call.1} parent=67 // pred_check_branch
          %447 = sbr.rel (%p445) target = $region76
        $region75: #{tpu_custom_call.1} parent=67 // pred_region
          %448 = dma.done [#allocation7], 256
        $region76: #{tpu_custom_call.1} parent=67 // pred_fallthru
          _
        // Predicated region
        $region77: #{tpu_custom_call.1} parent=67 // pred_check
          %p449 = pneg %p174
        $region78: #{tpu_custom_call.1} parent=67 // pred_check_branch
          %451 = sbr.rel (%p449) target = $region80
        $region79: #{tpu_custom_call.1} parent=67 // pred_region
          %452 = dma.done [#allocation7], 256
        $region80: #{tpu_custom_call.1} parent=67 // pred_fallthru
          _
        // Predicated region
        $region81: #{tpu_custom_call.1} parent=67 // pred_check
          %p453 = pneg %p195
        $region82: #{tpu_custom_call.1} parent=67 // pred_check_branch
          %455 = sbr.rel (%p453) target = $region84
        $region83: #{tpu_custom_call.1} parent=67 // pred_region
          %456 = dma.done [#allocation10], 256
        $region84: #{tpu_custom_call.1} parent=67 // pred_fallthru
          _
        %p457 = scmp.lt.s32.totalorder %s33, 1
        %s458 = scalar_select %p457, %s33, 1
        %p459 = scmp.lt.s32.totalorder %s34, 0
        %s460 = scalar_select %p459, %s34, 0
        %s461 = sadd.s32 %s460, %s458
        %s462 = smul.addr %s461, 8
        %s463 = scalar_lea.vmem %s0, %s462
        %p464 = pneg %p64
        %p465 = pneg %p61
        %p466 = scmp.lt.s32.totalorder %s33, 1
        %s467 = scalar_select %p466, %s33, 1
        %s468 = smul.addr %s467, 8
        %s469 = scalar_lea.vmem %s1, %s468
        %p470 = pneg %p90
        %p471 = pneg %p87
        %p472 = pneg %p111
        %p473 = pneg %p108
        %p474 = pneg %p132
        %p475 = pneg %p129
        %p476 = pneg %p153
        %p477 = pneg %p150
        %p478 = pneg %p174
        %p479 = pneg %p171
        %p480 = pneg %p195
        %p481 = pneg %p192
        %p482 = pneg %p216
        %p483 = pneg %p213
        %p484 = pneg %p237
        %p485 = pneg %p234
        %p486 = pneg %p258
        %p487 = pneg %p255
        %p488 = pneg %p279
        %p489 = pneg %p276
        %p490 = pneg %p300
        %p491 = pneg %p297
        %p492 = pneg %p328
        %p493 = pneg %p325
        %s494 = sand.u32 %s315, 1
        %s495 = scalar_lea.sflag [#allocation5], %s494
        %s496 = sand.u32 %s315, 1
        %s497 = smul.addr %s496, 8
        %s498 = scalar_lea.vmem [#allocation11], %s497
        %p499 = scmp.lt.s32.totalorder %s33, 1
        %s500 = scalar_select %p499, %s33, 1
        %p501 = scmp.lt.s32.totalorder %s34, 0
        %s502 = scalar_select %p501, %s34, 0
        %s503 = sadd.s32 %s502, %s500
        %s504 = smul.addr %s503, 8
        %s505 = scalar_lea.vmem %s0, %s504
        %p506 = scmp.lt.s32.totalorder %s33, 1
        %s507 = scalar_select %p506, %s33, 1
        %s508 = smul.addr %s507, 8
        %s509 = scalar_lea.vmem %s1, %s508
        %v511 = vld [vmem:[%s505] sm:$0xff]
        %v512 = vpack.c.bf16 %v511, %v511
        %v513 = vld [vmem:[%s509] sm:$0xff]
        %v514 = vpack.c.bf16 %v513, %v513
        %v515 = vld [vmem:[%s2] sm:$0xf]
        %v516 = vld [vmem:[%s2 + $0x4] sm:$0xf]
        %v517 = vld [vmem:[%s2 + $0x8] sm:$0xf]
        %v518 = vld [vmem:[%s2 + $0xc] sm:$0xf]
        %v523 = vunpack.c.l.b16 %v515
        %v524 = vunpack.c.l.b16 %v516
        %v525 = vunpack.c.l.b16 %v517
        %v526 = vunpack.c.l.b16 %v518
        %v527 = vpack.c.b16 %v524, %v523
        %v528 = vpack.c.b16 %v526, %v525
        %vm531 = vcmask 261120
        %v533 = vsel %vm531, %v512, 0
        %535 = vmatprep.subr.bf16.mxu0 0
        %536 = vmatpush1.bf16.msra.mxu0 %v527
        %537 = vmatprep.subr.bf16.mxu0 0
        %538 = vmatpush1.bf16.msra.mxu0 %v528
        %539 = vmatprep.subr.bf16.mxu0 0
        %540 = vmatpush1.bf16.msra.mxu0 0
        %541 = vmatprep.subr.bf16.mxu0 0
        %542 = vmatpush1.bf16.msra.mxu0 0
        %543 = vmatprep.subr.bf16.mxu0 0
        %544 = vmatpush1.bf16.msra.mxu0 0
        %545 = vmatprep.subr.bf16.mxu0 0
        %546 = vmatpush1.bf16.msra.mxu0 0
        %547 = vmatprep.subr.bf16.mxu0 0
        %548 = vmatpush1.bf16.msra.mxu0 0
        %549 = vmatprep.subr.bf16.mxu0 0
        %550 = vmatpush1.bf16.msra.mxu0 0
        %551 = vmatprep.subr.bf16.mxu0 0
        %552 = vmatpush1.bf16.msra.mxu0 0
        %553 = vmatprep.subr.bf16.mxu0 0
        %554 = vmatpush1.bf16.msra.mxu0 0
        %555 = vmatprep.subr.bf16.mxu0 0
        %556 = vmatpush1.bf16.msra.mxu0 0
        %557 = vmatprep.subr.bf16.mxu0 0
        %558 = vmatpush1.bf16.msra.mxu0 0
        %559 = vmatprep.subr.bf16.mxu0 0
        %560 = vmatpush1.bf16.msra.mxu0 0
        %561 = vmatprep.subr.bf16.mxu0 0
        %562 = vmatpush1.bf16.msra.mxu0 0
        %563 = vmatprep.subr.bf16.mxu0 0
        %564 = vmatpush1.bf16.msra.mxu0 0
        %565 = vmatprep.subr.bf16.mxu0 0
        %566 = vmatpush1.bf16.msra.mxu0 0
        %567 = vmatprep.mubr.bf16.mxu0 0
        %568 = vmatmul.mubr.bf16.gmra.mrb[0].mxu0 %v533
        %v569 = vpop.f32.mrb[0].mxu0
        %v570 = vadd.f32 0.0, %v569
        %v571 = vpop.f32.mrb[0].mxu0
        %v572 = vpop.f32.mrb[0].mxu0
        %v573 = vpop.f32.mrb[0].mxu0
        %574 = vdwg.mxu0
        %v575 = vld [vmem:[#allocation3] sm:$0xf]
        %v576 = vld [vmem:[#allocation3 + $0x4] sm:$0xf]
        %v577 = vld [vmem:[#allocation3 + $0x8] sm:$0xf]
        %v578 = vld [vmem:[#allocation3 + $0xc] sm:$0xf]
        %v583 = vunpack.c.l.b16 %v575
        %v584 = vunpack.c.l.b16 %v576
        %v585 = vunpack.c.l.b16 %v577
        %v586 = vunpack.c.l.b16 %v578
        %v587 = vpack.c.b16 %v584, %v583
        %v588 = vpack.c.b16 %v586, %v585
        %v592 = vsel %vm531, %v514, 0
        %594 = vmatprep.subr.bf16.mxu0 0
        %595 = vmatpush1.bf16.msra.mxu0 %v587
        %596 = vmatprep.subr.bf16.mxu0 0
        %597 = vmatpush1.bf16.msra.mxu0 %v588
        %598 = vmatprep.subr.bf16.mxu0 0
        %599 = vmatpush1.bf16.msra.mxu0 0
        %600 = vmatprep.subr.bf16.mxu0 0
        %601 = vmatpush1.bf16.msra.mxu0 0
        %602 = vmatprep.subr.bf16.mxu0 0
        %603 = vmatpush1.bf16.msra.mxu0 0
        %604 = vmatprep.subr.bf16.mxu0 0
        %605 = vmatpush1.bf16.msra.mxu0 0
        %606 = vmatprep.subr.bf16.mxu0 0
        %607 = vmatpush1.bf16.msra.mxu0 0
        %608 = vmatprep.subr.bf16.mxu0 0
        %609 = vmatpush1.bf16.msra.mxu0 0
        %610 = vmatprep.subr.bf16.mxu0 0
        %611 = vmatpush1.bf16.msra.mxu0 0
        %612 = vmatprep.subr.bf16.mxu0 0
        %613 = vmatpush1.bf16.msra.mxu0 0
        %614 = vmatprep.subr.bf16.mxu0 0
        %615 = vmatpush1.bf16.msra.mxu0 0
        %616 = vmatprep.subr.bf16.mxu0 0
        %617 = vmatpush1.bf16.msra.mxu0 0
        %618 = vmatprep.subr.bf16.mxu0 0
        %619 = vmatpush1.bf16.msra.mxu0 0
        %620 = vmatprep.subr.bf16.mxu0 0
        %621 = vmatpush1.bf16.msra.mxu0 0
        %622 = vmatprep.subr.bf16.mxu0 0
        %623 = vmatpush1.bf16.msra.mxu0 0
        %624 = vmatprep.subr.bf16.mxu0 0
        %625 = vmatpush1.bf16.msra.mxu0 0
        %626 = vmatprep.mubr.bf16.mxu0 0
        %627 = vmatmul.mubr.bf16.gmra.mrb[0].mxu0 %v592
        %v628 = vpop.f32.mrb[0].mxu0
        %v629 = vadd.f32 0.0, %v628
        %v630 = vpop.f32.mrb[0].mxu0
        %v631 = vpop.f32.mrb[0].mxu0
        %v632 = vpop.f32.mrb[0].mxu0
        %633 = vdwg.mxu0
        %v634 = vld [vmem:[#allocation6] sm:$0xf]
        %v635 = vld [vmem:[#allocation6 + $0x4] sm:$0xf]
        %v636 = vld [vmem:[#allocation6 + $0x8] sm:$0xf]
        %v637 = vld [vmem:[#allocation6 + $0xc] sm:$0xf]
        %v642 = vunpack.c.l.b16 %v634
        %v643 = vunpack.c.l.b16 %v635
        %v644 = vunpack.c.l.b16 %v636
        %v645 = vunpack.c.l.b16 %v637
        %v646 = vpack.c.b16 %v643, %v642
        %v647 = vpack.c.b16 %v645, %v644
        %650 = vmatprep.subr.bf16.mxu0 0
        %651 = vmatpush1.bf16.msra.mxu0 %v646
        %652 = vmatprep.subr.bf16.mxu0 0
        %653 = vmatpush1.bf16.msra.mxu0 %v647
        %654 = vmatprep.subr.bf16.mxu0 0
        %655 = vmatpush1.bf16.msra.mxu0 0
        %656 = vmatprep.subr.bf16.mxu0 0
        %657 = vmatpush1.bf16.msra.mxu0 0
        %658 = vmatprep.subr.bf16.mxu0 0
        %659 = vmatpush1.bf16.msra.mxu0 0
        %660 = vmatprep.subr.bf16.mxu0 0
        %661 = vmatpush1.bf16.msra.mxu0 0
        %662 = vmatprep.subr.bf16.mxu0 0
        %663 = vmatpush1.bf16.msra.mxu0 0
        %664 = vmatprep.subr.bf16.mxu0 0
        %665 = vmatpush1.bf16.msra.mxu0 0
        %666 = vmatprep.subr.bf16.mxu0 0
        %667 = vmatpush1.bf16.msra.mxu0 0
        %668 = vmatprep.subr.bf16.mxu0 0
        %669 = vmatpush1.bf16.msra.mxu0 0
        %670 = vmatprep.subr.bf16.mxu0 0
        %671 = vmatpush1.bf16.msra.mxu0 0
        %672 = vmatprep.subr.bf16.mxu0 0
        %673 = vmatpush1.bf16.msra.mxu0 0
        %674 = vmatprep.subr.bf16.mxu0 0
        %675 = vmatpush1.bf16.msra.mxu0 0
        %676 = vmatprep.subr.bf16.mxu0 0
        %677 = vmatpush1.bf16.msra.mxu0 0
        %678 = vmatprep.subr.bf16.mxu0 0
        %679 = vmatpush1.bf16.msra.mxu0 0
        %680 = vmatprep.subr.bf16.mxu0 0
        %681 = vmatpush1.bf16.msra.mxu0 0
        %682 = vmatprep.mubr.bf16.mxu0 0
        %683 = vmatmul.mubr.bf16.gmra.mrb[0].mxu0 %v592
        %v684 = vpop.f32.mrb[0].mxu0
        %v685 = vadd.f32 0.0, %v684
        %v686 = vpop.f32.mrb[0].mxu0
        %v687 = vpop.f32.mrb[0].mxu0
        %v688 = vpop.f32.mrb[0].mxu0
        %689 = vdwg.mxu0
        %v690 = vpack.c.bf16 %v570, %v570
        %v691 = vpack.c.bf16 %v629, %v629
        %v692 = vpack.c.bf16 %v685, %v685
        %vm693 = vcmask 64512
        %v695 = vsel %vm693, %v690, 0
        %v698 = vsel %vm693, %v691, 0
        %700 = vmatprep.subr.bf16.mxu0 0
        %701 = vmatpush1.bf16.xpose.msra.mxu0 %v698
        %702 = vmatprep.subr.bf16.mxu0 0
        %703 = vmatpush1.bf16.xpose.msra.mxu0 0
        %704 = vmatprep.subr.bf16.mxu0 0
        %705 = vmatpush1.bf16.xpose.msra.mxu0 0
        %706 = vmatprep.subr.bf16.mxu0 0
        %707 = vmatpush1.bf16.xpose.msra.mxu0 0
        %708 = vmatprep.subr.bf16.mxu0 0
        %709 = vmatpush1.bf16.xpose.msra.mxu0 0
        %710 = vmatprep.subr.bf16.mxu0 0
        %711 = vmatpush1.bf16.xpose.msra.mxu0 0
        %712 = vmatprep.subr.bf16.mxu0 0
        %713 = vmatpush1.bf16.xpose.msra.mxu0 0
        %714 = vmatprep.subr.bf16.mxu0 0
        %715 = vmatpush1.bf16.xpose.msra.mxu0 0
        %716 = vmatprep.subr.bf16.mxu0 0
        %717 = vmatpush1.bf16.xpose.msra.mxu0 0
        %718 = vmatprep.subr.bf16.mxu0 0
        %719 = vmatpush1.bf16.xpose.msra.mxu0 0
        %720 = vmatprep.subr.bf16.mxu0 0
        %721 = vmatpush1.bf16.xpose.msra.mxu0 0
        %722 = vmatprep.subr.bf16.mxu0 0
        %723 = vmatpush1.bf16.xpose.msra.mxu0 0
        %724 = vmatprep.subr.bf16.mxu0 0
        %725 = vmatpush1.bf16.xpose.msra.mxu0 0
        %726 = vmatprep.subr.bf16.mxu0 0
        %727 = vmatpush1.bf16.xpose.msra.mxu0 0
        %728 = vmatprep.subr.bf16.mxu0 0
        %729 = vmatpush1.bf16.xpose.msra.mxu0 0
        %730 = vmatprep.subr.bf16.mxu0 0
        %731 = vmatpush1.bf16.xpose.msra.mxu0 0
        %732 = vmatprep.mubr.bf16.mxu0 0
        %733 = vmatmul.mubr.bf16.gmra.mrb[0].mxu0 %v695
        %v734 = vpop.f32.mrb[0].mxu0
        %v735 = vadd.f32 0.0, %v734
        %v736 = vpop.f32.mrb[0].mxu0
        %v737 = vpop.f32.mrb[0].mxu0
        %v738 = vpop.f32.mrb[0].mxu0
        %739 = vdwg.mxu0
        %v740 = vmul.f32 %v735, 0.35355338
        %v741 = vsel %vm693, %v740, -inf
        %742 = vmax.xlane.f32.xlu0 %v741
        %v743 = vpop.xlane.xlu0 %742
        %v744 = vsub.f32 %v740, %v743
        %v745 = vmul.f32 %v744, 1.442695
        %v746 = vpow.pop %v745
        %v747 = vsel %vm693, %v746, 0.0
        %748 = vadd.xlane.f32.xlu0 %v747
        %v749 = vpop.xlane.xlu0 %748
        %v750 = vrcp.pop %v749
        %v751 = vmul.f32 %v746, %v750
        %v752 = vpack.c.bf16 %v751, %v751
        %v754 = vsel %vm693, %v752, 0
        %vm756 = vcmask 1043456
        %v758 = vsel %vm756, %v692, 0
        %760 = vmatprep.subr.bf16.mxu0 0
        %761 = vmatpush1.bf16.msra.mxu0 %v758
        %762 = vmatprep.subr.bf16.mxu0 0
        %763 = vmatpush1.bf16.msra.mxu0 0
        %764 = vmatprep.subr.bf16.mxu0 0
        %765 = vmatpush1.bf16.msra.mxu0 0
        %766 = vmatprep.subr.bf16.mxu0 0
        %767 = vmatpush1.bf16.msra.mxu0 0
        %768 = vmatprep.subr.bf16.mxu0 0
        %769 = vmatpush1.bf16.msra.mxu0 0
        %770 = vmatprep.subr.bf16.mxu0 0
        %771 = vmatpush1.bf16.msra.mxu0 0
        %772 = vmatprep.subr.bf16.mxu0 0
        %773 = vmatpush1.bf16.msra.mxu0 0
        %774 = vmatprep.subr.bf16.mxu0 0
        %775 = vmatpush1.bf16.msra.mxu0 0
        %776 = vmatprep.subr.bf16.mxu0 0
        %777 = vmatpush1.bf16.msra.mxu0 0
        %778 = vmatprep.subr.bf16.mxu0 0
        %779 = vmatpush1.bf16.msra.mxu0 0
        %780 = vmatprep.subr.bf16.mxu0 0
        %781 = vmatpush1.bf16.msra.mxu0 0
        %782 = vmatprep.subr.bf16.mxu0 0
        %783 = vmatpush1.bf16.msra.mxu0 0
        %784 = vmatprep.subr.bf16.mxu0 0
        %785 = vmatpush1.bf16.msra.mxu0 0
        %786 = vmatprep.subr.bf16.mxu0 0
        %787 = vmatpush1.bf16.msra.mxu0 0
        %788 = vmatprep.subr.bf16.mxu0 0
        %789 = vmatpush1.bf16.msra.mxu0 0
        %790 = vmatprep.subr.bf16.mxu0 0
        %791 = vmatpush1.bf16.msra.mxu0 0
        %792 = vmatprep.mubr.bf16.mxu0 0
        %793 = vmatmul.mubr.bf16.gmra.mrb[0].mxu0 %v754
        %v794 = vpop.f32.mrb[0].mxu0
        %v795 = vadd.f32 0.0, %v794
        %v796 = vpop.f32.mrb[0].mxu0
        %v797 = vpop.f32.mrb[0].mxu0
        %v798 = vpop.f32.mrb[0].mxu0
        %799 = vdwg.mxu0
        %800 = vst.msk [vmem:[#allocation2] sm:$0xff] %vm693, %v795
        %802 = vrot.lane.b32.xlu0 %v690, 120
        %v803 = vpop.permute.xlu0 %802
        %805 = vrot.lane.b32.xlu0 %v691, 120
        %v806 = vpop.permute.xlu0 %805
        %v808 = vsel %vm693, %v803, 0
        %v811 = vsel %vm693, %v806, 0
        %813 = vmatprep.subr.bf16.mxu0 0
        %814 = vmatpush1.bf16.xpose.msra.mxu0 %v811
        %815 = vmatprep.subr.bf16.mxu0 0
        %816 = vmatpush1.bf16.xpose.msra.mxu0 0
        %817 = vmatprep.subr.bf16.mxu0 0
        %818 = vmatpush1.bf16.xpose.msra.mxu0 0
        %819 = vmatprep.subr.bf16.mxu0 0
        %820 = vmatpush1.bf16.xpose.msra.mxu0 0
        %821 = vmatprep.subr.bf16.mxu0 0
        %822 = vmatpush1.bf16.xpose.msra.mxu0 0
        %823 = vmatprep.subr.bf16.mxu0 0
        %824 = vmatpush1.bf16.xpose.msra.mxu0 0
        %825 = vmatprep.subr.bf16.mxu0 0
        %826 = vmatpush1.bf16.xpose.msra.mxu0 0
        %827 = vmatprep.subr.bf16.mxu0 0
        %828 = vmatpush1.bf16.xpose.msra.mxu0 0
        %829 = vmatprep.subr.bf16.mxu0 0
        %830 = vmatpush1.bf16.xpose.msra.mxu0 0
        %831 = vmatprep.subr.bf16.mxu0 0
        %832 = vmatpush1.bf16.xpose.msra.mxu0 0
        %833 = vmatprep.subr.bf16.mxu0 0
        %834 = vmatpush1.bf16.xpose.msra.mxu0 0
        %835 = vmatprep.subr.bf16.mxu0 0
        %836 = vmatpush1.bf16.xpose.msra.mxu0 0
        %837 = vmatprep.subr.bf16.mxu0 0
        %838 = vmatpush1.bf16.xpose.msra.mxu0 0
        %839 = vmatprep.subr.bf16.mxu0 0
        %840 = vmatpush1.bf16.xpose.msra.mxu0 0
        %841 = vmatprep.subr.bf16.mxu0 0
        %842 = vmatpush1.bf16.xpose.msra.mxu0 0
        %843 = vmatprep.subr.bf16.mxu0 0
        %844 = vmatpush1.bf16.xpose.msra.mxu0 0
        %845 = vmatprep.mubr.bf16.mxu0 0
        %846 = vmatmul.mubr.bf16.gmra.mrb[0].mxu0 %v808
        %v847 = vpop.f32.mrb[0].mxu0
        %v848 = vadd.f32 0.0, %v847
        %v849 = vpop.f32.mrb[0].mxu0
        %v850 = vpop.f32.mrb[0].mxu0
        %v851 = vpop.f32.mrb[0].mxu0
        %852 = vdwg.mxu0
        %v853 = vmul.f32 %v848, 0.35355338
        %v854 = vsel %vm693, %v853, -inf
        %855 = vmax.xlane.f32.xlu0 %v854
        %v856 = vpop.xlane.xlu0 %855
        %v857 = vsub.f32 %v853, %v856
        %v858 = vmul.f32 %v857, 1.442695
        %v859 = vpow.pop %v858
        %v860 = vsel %vm693, %v859, 0.0
        %861 = vadd.xlane.f32.xlu0 %v860
        %v862 = vpop.xlane.xlu0 %861
        %v863 = vrcp.pop %v862
        %v864 = vmul.f32 %v859, %v863
        %v865 = vpack.c.bf16 %v864, %v864
        %867 = vrot.lane.b32.xlu0 %v692, 120
        %v868 = vpop.permute.xlu0 %867
        %v870 = vsel %vm693, %v865, 0
        %v873 = vsel %vm756, %v868, 0
        %875 = vmatprep.subr.bf16.mxu0 0
        %876 = vmatpush1.bf16.msra.mxu0 %v873
        %877 = vmatprep.subr.bf16.mxu0 0
        %878 = vmatpush1.bf16.msra.mxu0 0
        %879 = vmatprep.subr.bf16.mxu0 0
        %880 = vmatpush1.bf16.msra.mxu0 0
        %881 = vmatprep.subr.bf16.mxu0 0
        %882 = vmatpush1.bf16.msra.mxu0 0
        %883 = vmatprep.subr.bf16.mxu0 0
        %884 = vmatpush1.bf16.msra.mxu0 0
        %885 = vmatprep.subr.bf16.mxu0 0
        %886 = vmatpush1.bf16.msra.mxu0 0
        %887 = vmatprep.subr.bf16.mxu0 0
        %888 = vmatpush1.bf16.msra.mxu0 0
        %889 = vmatprep.subr.bf16.mxu0 0
        %890 = vmatpush1.bf16.msra.mxu0 0
        %891 = vmatprep.subr.bf16.mxu0 0
        %892 = vmatpush1.bf16.msra.mxu0 0
        %893 = vmatprep.subr.bf16.mxu0 0
        %894 = vmatpush1.bf16.msra.mxu0 0
        %895 = vmatprep.subr.bf16.mxu0 0
        %896 = vmatpush1.bf16.msra.mxu0 0
        %897 = vmatprep.subr.bf16.mxu0 0
        %898 = vmatpush1.bf16.msra.mxu0 0
        %899 = vmatprep.subr.bf16.mxu0 0
        %900 = vmatpush1.bf16.msra.mxu0 0
        %901 = vmatprep.subr.bf16.mxu0 0
        %902 = vmatpush1.bf16.msra.mxu0 0
        %903 = vmatprep.subr.bf16.mxu0 0
        %904 = vmatpush1.bf16.msra.mxu0 0
        %905 = vmatprep.subr.bf16.mxu0 0
        %906 = vmatpush1.bf16.msra.mxu0 0
        %907 = vmatprep.mubr.bf16.mxu0 0
        %908 = vmatmul.mubr.bf16.gmra.mrb[0].mxu0 %v870
        %v909 = vpop.f32.mrb[0].mxu0
        %v910 = vadd.f32 0.0, %v909
        %v911 = vpop.f32.mrb[0].mxu0
        %v912 = vpop.f32.mrb[0].mxu0
        %v913 = vpop.f32.mrb[0].mxu0
        %914 = vdwg.mxu0
        %916 = vrot.lane.b32.xlu0 %v910, 8
        %v917 = vpop.permute.xlu0 %916
        %vm919 = vcmask 130112
        %920 = vst.msk [vmem:[#allocation2] sm:$0xff] %vm919, %v917
        %921 = vrot.lane.b32.xlu0 %v690, 112
        %v922 = vpop.permute.xlu0 %921
        %923 = vrot.lane.b32.xlu0 %v691, 112
        %v924 = vpop.permute.xlu0 %923
        %v926 = vsel %vm693, %v922, 0
        %v929 = vsel %vm693, %v924, 0
        %931 = vmatprep.subr.bf16.mxu0 0
        %932 = vmatpush1.bf16.xpose.msra.mxu0 %v929
        %933 = vmatprep.subr.bf16.mxu0 0
        %934 = vmatpush1.bf16.xpose.msra.mxu0 0
        %935 = vmatprep.subr.bf16.mxu0 0
        %936 = vmatpush1.bf16.xpose.msra.mxu0 0
        %937 = vmatprep.subr.bf16.mxu0 0
        %938 = vmatpush1.bf16.xpose.msra.mxu0 0
        %939 = vmatprep.subr.bf16.mxu0 0
        %940 = vmatpush1.bf16.xpose.msra.mxu0 0
        %941 = vmatprep.subr.bf16.mxu0 0
        %942 = vmatpush1.bf16.xpose.msra.mxu0 0
        %943 = vmatprep.subr.bf16.mxu0 0
        %944 = vmatpush1.bf16.xpose.msra.mxu0 0
        %945 = vmatprep.subr.bf16.mxu0 0
        %946 = vmatpush1.bf16.xpose.msra.mxu0 0
        %947 = vmatprep.subr.bf16.mxu0 0
        %948 = vmatpush1.bf16.xpose.msra.mxu0 0
        %949 = vmatprep.subr.bf16.mxu0 0
        %950 = vmatpush1.bf16.xpose.msra.mxu0 0
        %951 = vmatprep.subr.bf16.mxu0 0
        %952 = vmatpush1.bf16.xpose.msra.mxu0 0
        %953 = vmatprep.subr.bf16.mxu0 0
        %954 = vmatpush1.bf16.xpose.msra.mxu0 0
        %955 = vmatprep.subr.bf16.mxu0 0
        %956 = vmatpush1.bf16.xpose.msra.mxu0 0
        %957 = vmatprep.subr.bf16.mxu0 0
        %958 = vmatpush1.bf16.xpose.msra.mxu0 0
        %959 = vmatprep.subr.bf16.mxu0 0
        %960 = vmatpush1.bf16.xpose.msra.mxu0 0
        %961 = vmatprep.subr.bf16.mxu0 0
        %962 = vmatpush1.bf16.xpose.msra.mxu0 0
        %963 = vmatprep.mubr.bf16.mxu0 0
        %964 = vmatmul.mubr.bf16.gmra.mrb[0].mxu0 %v926
        %v965 = vpop.f32.mrb[0].mxu0
        %v966 = vadd.f32 0.0, %v965
        %v967 = vpop.f32.mrb[0].mxu0
        %v968 = vpop.f32.mrb[0].mxu0
        %v969 = vpop.f32.mrb[0].mxu0
        %970 = vdwg.mxu0
        %v971 = vmul.f32 %v966, 0.35355338
        %v972 = vsel %vm693, %v971, -inf
        %973 = vmax.xlane.f32.xlu0 %v972
        %v974 = vpop.xlane.xlu0 %973
        %v975 = vsub.f32 %v971, %v974
        %v976 = vmul.f32 %v975, 1.442695
        %v977 = vpow.pop %v976
        %v978 = vsel %vm693, %v977, 0.0
        %979 = vadd.xlane.f32.xlu0 %v978
        %v980 = vpop.xlane.xlu0 %979
        %v981 = vrcp.pop %v980
        %v982 = vmul.f32 %v977, %v981
        %v983 = vpack.c.bf16 %v982, %v982
        %984 = vrot.lane.b32.xlu0 %v692, 112
        %v985 = vpop.permute.xlu0 %984
        %v987 = vsel %vm693, %v983, 0
        %v990 = vsel %vm756, %v985, 0
        %992 = vmatprep.subr.bf16.mxu0 0
        %993 = vmatpush1.bf16.msra.mxu0 %v990
        %994 = vmatprep.subr.bf16.mxu0 0
        %995 = vmatpush1.bf16.msra.mxu0 0
        %996 = vmatprep.subr.bf16.mxu0 0
        %997 = vmatpush1.bf16.msra.mxu0 0
        %998 = vmatprep.subr.bf16.mxu0 0
        %999 = vmatpush1.bf16.msra.mxu0 0
        %1000 = vmatprep.subr.bf16.mxu0 0
        %1001 = vmatpush1.bf16.msra.mxu0 0
        %1002 = vmatprep.subr.bf16.mxu0 0
        %1003 = vmatpush1.bf16.msra.mxu0 0
        %1004 = vmatprep.subr.bf16.mxu0 0
        %1005 = vmatpush1.bf16.msra.mxu0 0
        %1006 = vmatprep.subr.bf16.mxu0 0
        %1007 = vmatpush1.bf16.msra.mxu0 0
        %1008 = vmatprep.subr.bf16.mxu0 0
        %1009 = vmatpush1.bf16.msra.mxu0 0
        %1010 = vmatprep.subr.bf16.mxu0 0
        %1011 = vmatpush1.bf16.msra.mxu0 0
        %1012 = vmatprep.subr.bf16.mxu0 0
        %1013 = vmatpush1.bf16.msra.mxu0 0
        %1014 = vmatprep.subr.bf16.mxu0 0
        %1015 = vmatpush1.bf16.msra.mxu0 0
        %1016 = vmatprep.subr.bf16.mxu0 0
        %1017 = vmatpush1.bf16.msra.mxu0 0
        %1018 = vmatprep.subr.bf16.mxu0 0
        %1019 = vmatpush1.bf16.msra.mxu0 0
        %1020 = vmatprep.subr.bf16.mxu0 0
        %1021 = vmatpush1.bf16.msra.mxu0 0
        %1022 = vmatprep.subr.bf16.mxu0 0
        %1023 = vmatpush1.bf16.msra.mxu0 0
        %1024 = vmatprep.mubr.bf16.mxu0 0
        %1025 = vmatmul.mubr.bf16.gmra.mrb[0].mxu0 %v987
        %v1026 = vpop.f32.mrb[0].mxu0
        %v1027 = vadd.f32 0.0, %v1026
        %v1028 = vpop.f32.mrb[0].mxu0
        %v1029 = vpop.f32.mrb[0].mxu0
        %v1030 = vpop.f32.mrb[0].mxu0
        %1031 = vdwg.mxu0
        %1033 = vrot.lane.b32.xlu0 %v1027, 16
        %v1034 = vpop.permute.xlu0 %1033
        %vm1036 = vcmask 195712
        %1037 = vst.msk [vmem:[#allocation2] sm:$0xff] %vm1036, %v1034
        %1038 = vrot.lane.b32.xlu0 %v690, 104
        %v1039 = vpop.permute.xlu0 %1038
        %1040 = vrot.lane.b32.xlu0 %v691, 104
        %v1041 = vpop.permute.xlu0 %1040
        %v1043 = vsel %vm693, %v1039, 0
        %v1046 = vsel %vm693, %v1041, 0
        %1048 = vmatprep.subr.bf16.mxu0 0
        %1049 = vmatpush1.bf16.xpose.msra.mxu0 %v1046
        %1050 = vmatprep.subr.bf16.mxu0 0
        %1051 = vmatpush1.bf16.xpose.msra.mxu0 0
        %1052 = vmatprep.subr.bf16.mxu0 0
        %1053 = vmatpush1.bf16.xpose.msra.mxu0 0
        %1054 = vmatprep.subr.bf16.mxu0 0
        %1055 = vmatpush1.bf16.xpose.msra.mxu0 0
        %1056 = vmatprep.subr.bf16.mxu0 0
        %1057 = vmatpush1.bf16.xpose.msra.mxu0 0
        %1058 = vmatprep.subr.bf16.mxu0 0
        %1059 = vmatpush1.bf16.xpose.msra.mxu0 0
        %1060 = vmatprep.subr.bf16.mxu0 0
        %1061 = vmatpush1.bf16.xpose.msra.mxu0 0
        %1062 = vmatprep.subr.bf16.mxu0 0
        %1063 = vmatpush1.bf16.xpose.msra.mxu0 0
        %1064 = vmatprep.subr.bf16.mxu0 0
        %1065 = vmatpush1.bf16.xpose.msra.mxu0 0
        %1066 = vmatprep.subr.bf16.mxu0 0
        %1067 = vmatpush1.bf16.xpose.msra.mxu0 0
        %1068 = vmatprep.subr.bf16.mxu0 0
        %1069 = vmatpush1.bf16.xpose.msra.mxu0 0
        %1070 = vmatprep.subr.bf16.mxu0 0
        %1071 = vmatpush1.bf16.xpose.msra.mxu0 0
        %1072 = vmatprep.subr.bf16.mxu0 0
        %1073 = vmatpush1.bf16.xpose.msra.mxu0 0
        %1074 = vmatprep.subr.bf16.mxu0 0
        %1075 = vmatpush1.bf16.xpose.msra.mxu0 0
        %1076 = vmatprep.subr.bf16.mxu0 0
        %1077 = vmatpush1.bf16.xpose.msra.mxu0 0
        %1078 = vmatprep.subr.bf16.mxu0 0
        %1079 = vmatpush1.bf16.xpose.msra.mxu0 0
        %1080 = vmatprep.mubr.bf16.mxu0 0
        %1081 = vmatmul.mubr.bf16.gmra.mrb[0].mxu0 %v1043
        %v1082 = vpop.f32.mrb[0].mxu0
        %v1083 = vadd.f32 0.0, %v1082
        %v1084 = vpop.f32.mrb[0].mxu0
        %v1085 = vpop.f32.mrb[0].mxu0
        %v1086 = vpop.f32.mrb[0].mxu0
        %1087 = vdwg.mxu0
        %v1088 = vmul.f32 %v1083, 0.35355338
        %v1089 = vsel %vm693, %v1088, -inf
        %1090 = vmax.xlane.f32.xlu0 %v1089
        %v1091 = vpop.xlane.xlu0 %1090
        %v1092 = vsub.f32 %v1088, %v1091
        %v1093 = vmul.f32 %v1092, 1.442695
        %v1094 = vpow.pop %v1093
        %v1095 = vsel %vm693, %v1094, 0.0
        %1096 = vadd.xlane.f32.xlu0 %v1095
        %v1097 = vpop.xlane.xlu0 %1096
        %v1098 = vrcp.pop %v1097
        %v1099 = vmul.f32 %v1094, %v1098
        %v1100 = vpack.c.bf16 %v1099, %v1099
        %1101 = vrot.lane.b32.xlu0 %v692, 104
        %v1102 = vpop.permute.xlu0 %1101
        %v1104 = vsel %vm693, %v1100, 0
        %v1107 = vsel %vm756, %v1102, 0
        %1109 = vmatprep.subr.bf16.mxu0 0
        %1110 = vmatpush1.bf16.msra.mxu0 %v1107
        %1111 = vmatprep.subr.bf16.mxu0 0
        %1112 = vmatpush1.bf16.msra.mxu0 0
        %1113 = vmatprep.subr.bf16.mxu0 0
        %1114 = vmatpush1.bf16.msra.mxu0 0
        %1115 = vmatprep.subr.bf16.mxu0 0
        %1116 = vmatpush1.bf16.msra.mxu0 0
        %1117 = vmatprep.subr.bf16.mxu0 0
        %1118 = vmatpush1.bf16.msra.mxu0 0
        %1119 = vmatprep.subr.bf16.mxu0 0
        %1120 = vmatpush1.bf16.msra.mxu0 0
        %1121 = vmatprep.subr.bf16.mxu0 0
        %1122 = vmatpush1.bf16.msra.mxu0 0
        %1123 = vmatprep.subr.bf16.mxu0 0
        %1124 = vmatpush1.bf16.msra.mxu0 0
        %1125 = vmatprep.subr.bf16.mxu0 0
        %1126 = vmatpush1.bf16.msra.mxu0 0
        %1127 = vmatprep.subr.bf16.mxu0 0
        %1128 = vmatpush1.bf16.msra.mxu0 0
        %1129 = vmatprep.subr.bf16.mxu0 0
        %1130 = vmatpush1.bf16.msra.mxu0 0
        %1131 = vmatprep.subr.bf16.mxu0 0
        %1132 = vmatpush1.bf16.msra.mxu0 0
        %1133 = vmatprep.subr.bf16.mxu0 0
        %1134 = vmatpush1.bf16.msra.mxu0 0
        %1135 = vmatprep.subr.bf16.mxu0 0
        %1136 = vmatpush1.bf16.msra.mxu0 0
        %1137 = vmatprep.subr.bf16.mxu0 0
        %1138 = vmatpush1.bf16.msra.mxu0 0
        %1139 = vmatprep.subr.bf16.mxu0 0
        %1140 = vmatpush1.bf16.msra.mxu0 0
        %1141 = vmatprep.mubr.bf16.mxu0 0
        %1142 = vmatmul.mubr.bf16.gmra.mrb[0].mxu0 %v1104
        %v1143 = vpop.f32.mrb[0].mxu0
        %v1144 = vadd.f32 0.0, %v1143
        %v1145 = vpop.f32.mrb[0].mxu0
        %v1146 = vpop.f32.mrb[0].mxu0
        %v1147 = vpop.f32.mrb[0].mxu0
        %1148 = vdwg.mxu0
        %1150 = vrot.lane.b32.xlu0 %v1144, 24
        %v1151 = vpop.permute.xlu0 %1150
        %vm1153 = vcmask 261312
        %1154 = vst.msk [vmem:[#allocation2] sm:$0xff] %vm1153, %v1151
        %v1155 = vld [vmem:[#allocation2] sm:$0xff]
        %v1156 = vpack.c.bf16 %v1155, %v1155
        %v1157 = vld [vmem:[#allocation8] sm:$0xf]
        %v1158 = vld [vmem:[#allocation8 + $0x4] sm:$0xf]
        %v1159 = vld [vmem:[#allocation8 + $0x8] sm:$0xf]
        %v1160 = vld [vmem:[#allocation8 + $0xc] sm:$0xf]
        %v1165 = vunpack.c.l.b16 %v1157
        %v1166 = vunpack.c.l.b16 %v1158
        %v1167 = vunpack.c.l.b16 %v1159
        %v1168 = vunpack.c.l.b16 %v1160
        %v1169 = vpack.c.b16 %v1166, %v1165
        %v1170 = vpack.c.b16 %v1168, %v1167
        %v1174 = vsel %vm531, %v1156, 0
        %1176 = vmatprep.subr.bf16.mxu0 0
        %1177 = vmatpush1.bf16.msra.mxu0 %v1169
        %1178 = vmatprep.subr.bf16.mxu0 0
        %1179 = vmatpush1.bf16.msra.mxu0 %v1170
        %1180 = vmatprep.subr.bf16.mxu0 0
        %1181 = vmatpush1.bf16.msra.mxu0 0
        %1182 = vmatprep.subr.bf16.mxu0 0
        %1183 = vmatpush1.bf16.msra.mxu0 0
        %1184 = vmatprep.subr.bf16.mxu0 0
        %1185 = vmatpush1.bf16.msra.mxu0 0
        %1186 = vmatprep.subr.bf16.mxu0 0
        %1187 = vmatpush1.bf16.msra.mxu0 0
        %1188 = vmatprep.subr.bf16.mxu0 0
        %1189 = vmatpush1.bf16.msra.mxu0 0
        %1190 = vmatprep.subr.bf16.mxu0 0
        %1191 = vmatpush1.bf16.msra.mxu0 0
        %1192 = vmatprep.subr.bf16.mxu0 0
        %1193 = vmatpush1.bf16.msra.mxu0 0
        %1194 = vmatprep.subr.bf16.mxu0 0
        %1195 = vmatpush1.bf16.msra.mxu0 0
        %1196 = vmatprep.subr.bf16.mxu0 0
        %1197 = vmatpush1.bf16.msra.mxu0 0
        %1198 = vmatprep.subr.bf16.mxu0 0
        %1199 = vmatpush1.bf16.msra.mxu0 0
        %1200 = vmatprep.subr.bf16.mxu0 0
        %1201 = vmatpush1.bf16.msra.mxu0 0
        %1202 = vmatprep.subr.bf16.mxu0 0
        %1203 = vmatpush1.bf16.msra.mxu0 0
        %1204 = vmatprep.subr.bf16.mxu0 0
        %1205 = vmatpush1.bf16.msra.mxu0 0
        %1206 = vmatprep.subr.bf16.mxu0 0
        %1207 = vmatpush1.bf16.msra.mxu0 0
        %1208 = vmatprep.mubr.bf16.mxu0 0
        %1209 = vmatmul.mubr.bf16.gmra.mrb[0].mxu0 %v1174
        %v1210 = vpop.f32.mrb[0].mxu0
        %v1211 = vadd.f32 0.0, %v1210
        %v1212 = vpop.f32.mrb[0].mxu0
        %v1213 = vpop.f32.mrb[0].mxu0
        %v1214 = vpop.f32.mrb[0].mxu0
        %1215 = vdwg.mxu0
        %v1216 = vadd.f32 %v511, %v1211
        %v1217 = vld [vmem:[%s8] sm:$0x1]
        %v1218 = vld [vmem:[%s9] sm:$0x1]
        %v1219 = vsel %vm531, %v1216, 0.0
        %1220 = vadd.xlane.f32.xlu0 %v1219
        %v1221 = vpop.xlane.xlu0 %1220
        %v1222 = vrcp.pop 32.0
        %v1223 = vmul.f32 %v1221, %v1222
        %v1224 = vsub.f32 %v1216, %v1223
        %v1225 = vmul.f32 %v1224, %v1224
        %v1226 = vsel %vm531, %v1225, 0.0
        %1227 = vadd.xlane.f32.xlu0 %v1226
        %v1228 = vpop.xlane.xlu0 %1227
        %v1229 = vmul.f32 %v1228, %v1222
        %v1230 = vadd.f32 %v1229, 1e-05
        %v1231 = vrsqrt.pop %v1230
        %v1232 = vmul.f32 %v1224, %v1231
        %v1234 = vlaneseq
        %v1235 = vshrl.u32 %v1234, 7
        %v1236 = vsub.s32 0, %v1235
        %v1237 = vrot.slane %v1217, %v1236
        %v1239 = vmul.f32 %v1232, %v1237
        %v1241 = vlaneseq
        %v1242 = vshrl.u32 %v1241, 7
        %v1243 = vsub.s32 0, %v1242
        %v1244 = vrot.slane %v1218, %v1243
        %v1246 = vadd.f32 %v1239, %v1244
        %v1247 = vpack.c.bf16 %v1246, %v1246
        %v1248 = vld [vmem:[#allocation9] sm:$0xf]
        %v1249 = vld [vmem:[#allocation9 + $0x4] sm:$0xf]
        %v1250 = vld [vmem:[#allocation9 + $0x8] sm:$0xf]
        %v1251 = vld [vmem:[#allocation9 + $0xc] sm:$0xf]
        %v1256 = vunpack.c.l.b16 %v1248
        %v1257 = vunpack.c.l.b16 %v1249
        %v1258 = vunpack.c.l.b16 %v1250
        %v1259 = vunpack.c.l.b16 %v1251
        %v1260 = vpack.c.b16 %v1257, %v1256
        %v1261 = vpack.c.b16 %v1259, %v1258
        %v1265 = vsel %vm531, %v1247, 0
        %1267 = vmatprep.subr.bf16.mxu0 0
        %1268 = vmatpush1.bf16.msra.mxu0 %v1260
        %1269 = vmatprep.subr.bf16.mxu0 0
        %1270 = vmatpush1.bf16.msra.mxu0 %v1261
        %1271 = vmatprep.subr.bf16.mxu0 0
        %1272 = vmatpush1.bf16.msra.mxu0 0
        %1273 = vmatprep.subr.bf16.mxu0 0
        %1274 = vmatpush1.bf16.msra.mxu0 0
        %1275 = vmatprep.subr.bf16.mxu0 0
        %1276 = vmatpush1.bf16.msra.mxu0 0
        %1277 = vmatprep.subr.bf16.mxu0 0
        %1278 = vmatpush1.bf16.msra.mxu0 0
        %1279 = vmatprep.subr.bf16.mxu0 0
        %1280 = vmatpush1.bf16.msra.mxu0 0
        %1281 = vmatprep.subr.bf16.mxu0 0
        %1282 = vmatpush1.bf16.msra.mxu0 0
        %1283 = vmatprep.subr.bf16.mxu0 0
        %1284 = vmatpush1.bf16.msra.mxu0 0
        %1285 = vmatprep.subr.bf16.mxu0 0
        %1286 = vmatpush1.bf16.msra.mxu0 0
        %1287 = vmatprep.subr.bf16.mxu0 0
        %1288 = vmatpush1.bf16.msra.mxu0 0
        %1289 = vmatprep.subr.bf16.mxu0 0
        %1290 = vmatpush1.bf16.msra.mxu0 0
        %1291 = vmatprep.subr.bf16.mxu0 0
        %1292 = vmatpush1.bf16.msra.mxu0 0
        %1293 = vmatprep.subr.bf16.mxu0 0
        %1294 = vmatpush1.bf16.msra.mxu0 0
        %1295 = vmatprep.subr.bf16.mxu0 0
        %1296 = vmatpush1.bf16.msra.mxu0 0
        %1297 = vmatprep.subr.bf16.mxu0 0
        %1298 = vmatpush1.bf16.msra.mxu0 0
        %1299 = vmatprep.mubr.bf16.mxu0 0
        %1300 = vmatmul.mubr.bf16.gmra.mrb[0].mxu0 %v1265
        %v1301 = vpop.f32.mrb[0].mxu0
        %v1302 = vadd.f32 0.0, %v1301
        %v1303 = vpop.f32.mrb[0].mxu0
        %v1304 = vpop.f32.mrb[0].mxu0
        %v1305 = vpop.f32.mrb[0].mxu0
        %1306 = vdwg.mxu0
        %v1307 = vmax.f32 %v1302, 0.0
        %v1308 = vpack.c.bf16 %v1307, %v1307
        %v1309 = vld [vmem:[%s7] sm:$0xf]
        %v1310 = vld [vmem:[%s7 + $0x4] sm:$0xf]
        %v1311 = vld [vmem:[%s7 + $0x8] sm:$0xf]
        %v1312 = vld [vmem:[%s7 + $0xc] sm:$0xf]
        %v1313 = vld [vmem:[%s7 + $0x10] sm:$0xf]
        %v1314 = vld [vmem:[%s7 + $0x14] sm:$0xf]
        %v1315 = vld [vmem:[%s7 + $0x18] sm:$0xf]
        %v1316 = vld [vmem:[%s7 + $0x1c] sm:$0xf]
        %v1325 = vunpack.c.l.b16 %v1309
        %v1326 = vunpack.c.l.b16 %v1310
        %v1327 = vunpack.c.l.b16 %v1311
        %v1328 = vunpack.c.l.b16 %v1312
        %v1329 = vunpack.c.l.b16 %v1313
        %v1330 = vunpack.c.l.b16 %v1314
        %v1331 = vunpack.c.l.b16 %v1315
        %v1332 = vunpack.c.l.b16 %v1316
        %v1333 = vpack.c.b16 %v1326, %v1325
        %v1334 = vpack.c.b16 %v1328, %v1327
        %v1335 = vpack.c.b16 %v1330, %v1329
        %v1336 = vpack.c.b16 %v1332, %v1331
        %vm1341 = vcmask 523264
        %v1343 = vsel %vm1341, %v1308, 0
        %1345 = vmatprep.subr.bf16.mxu0 0
        %1346 = vmatpush1.bf16.msra.mxu0 %v1333
        %1347 = vmatprep.subr.bf16.mxu0 0
        %1348 = vmatpush1.bf16.msra.mxu0 %v1334
        %1349 = vmatprep.subr.bf16.mxu0 0
        %1350 = vmatpush1.bf16.msra.mxu0 %v1335
        %1351 = vmatprep.subr.bf16.mxu0 0
        %1352 = vmatpush1.bf16.msra.mxu0 %v1336
        %1353 = vmatprep.subr.bf16.mxu0 0
        %1354 = vmatpush1.bf16.msra.mxu0 0
        %1355 = vmatprep.subr.bf16.mxu0 0
        %1356 = vmatpush1.bf16.msra.mxu0 0
        %1357 = vmatprep.subr.bf16.mxu0 0
        %1358 = vmatpush1.bf16.msra.mxu0 0
        %1359 = vmatprep.subr.bf16.mxu0 0
        %1360 = vmatpush1.bf16.msra.mxu0 0
        %1361 = vmatprep.subr.bf16.mxu0 0
        %1362 = vmatpush1.bf16.msra.mxu0 0
        %1363 = vmatprep.subr.bf16.mxu0 0
        %1364 = vmatpush1.bf16.msra.mxu0 0
        %1365 = vmatprep.subr.bf16.mxu0 0
        %1366 = vmatpush1.bf16.msra.mxu0 0
        %1367 = vmatprep.subr.bf16.mxu0 0
        %1368 = vmatpush1.bf16.msra.mxu0 0
        %1369 = vmatprep.subr.bf16.mxu0 0
        %1370 = vmatpush1.bf16.msra.mxu0 0
        %1371 = vmatprep.subr.bf16.mxu0 0
        %1372 = vmatpush1.bf16.msra.mxu0 0
        %1373 = vmatprep.subr.bf16.mxu0 0
        %1374 = vmatpush1.bf16.msra.mxu0 0
        %1375 = vmatprep.subr.bf16.mxu0 0
        %1376 = vmatpush1.bf16.msra.mxu0 0
        %1377 = vmatprep.mubr.bf16.mxu0 0
        %1378 = vmatmul.mubr.bf16.gmra.mrb[0].mxu0 %v1343
        %v1379 = vpop.f32.mrb[0].mxu0
        %v1380 = vadd.f32 0.0, %v1379
        %v1381 = vpop.f32.mrb[0].mxu0
        %v1382 = vpop.f32.mrb[0].mxu0
        %v1383 = vpop.f32.mrb[0].mxu0
        %1384 = vdwg.mxu0
        %v1385 = vadd.f32 %v1246, %v1380
        %v1386 = vld [vmem:[%s10] sm:$0x1]
        %v1387 = vld [vmem:[%s11] sm:$0x1]
        %v1388 = vsel %vm531, %v1385, 0.0
        %1389 = vadd.xlane.f32.xlu0 %v1388
        %v1390 = vpop.xlane.xlu0 %1389
        %v1391 = vmul.f32 %v1390, %v1222
        %v1392 = vsub.f32 %v1385, %v1391
        %v1393 = vmul.f32 %v1392, %v1392
        %v1394 = vsel %vm531, %v1393, 0.0
        %1395 = vadd.xlane.f32.xlu0 %v1394
        %v1396 = vpop.xlane.xlu0 %1395
        %v1397 = vmul.f32 %v1396, %v1222
        %v1398 = vadd.f32 %v1397, 1e-05
        %v1399 = vrsqrt.pop %v1398
        %v1400 = vmul.f32 %v1392, %v1399
        %v1402 = vlaneseq
        %v1403 = vshrl.u32 %v1402, 7
        %v1404 = vsub.s32 0, %v1403
        %v1405 = vrot.slane %v1386, %v1404
        %v1407 = vmul.f32 %v1400, %v1405
        %v1409 = vlaneseq
        %v1410 = vshrl.u32 %v1409, 7
        %v1411 = vsub.s32 0, %v1410
        %v1412 = vrot.slane %v1387, %v1411
        %v1414 = vadd.f32 %v1407, %v1412
        %1415 = vst.msk [vmem:[%s498] sm:$0xff] %vm531, %v1414
        %s1416 = sand.u32 %s315, 1
        %s1417 = scalar_lea.sflag [#allocation5], %s1416
        %s1418 = sand.u32 %s315, 1
        %s1419 = smul.addr %s1418, 8
        %s1420 = scalar_lea.vmem [#allocation11], %s1419
        // Predicated region
        $region85: #{tpu_custom_call.1} parent=67 // pred_check
          %p1421 = pneg %p325
        $region86: #{tpu_custom_call.1} parent=67 // pred_check_branch
          %1423 = sbr.rel (%p1421) target = $region88
        $region87: #{tpu_custom_call.1} parent=67 // pred_region
          %s1425 = ssub.s32 128, 128
          %1426 = vsyncadd %s1417, %s1425
          %s1427 = sadd.s32 %s34, %s33
          %s1428 = smul.addr %s1427, 128
          %s1429 = scalar_lea.hbm %s12, %s1428
          %s1431 = sshll.u32 %s1420, 4
          %s1432 = int_to_ptr.vmem [resolvable:$true] %s1431
          %1434 = dma.vmem_to_hbm [thread:$0]  %s1432, 128, %s1429, %s1417
        $region88: #{tpu_custom_call.1} parent=67 // pred_fallthru
          _
      $region68: #{tpu_custom_call.1} parent=5 // pred_fallthru
        _
      %p1435 = scmp.le.s32.totalorder 2, %s24
      // Predicated region
      $region89: #{tpu_custom_call.1} parent=5 // pred_check
        %p1436 = pneg %p1435
      $region90: #{tpu_custom_call.1} parent=5 // pred_check_branch
        %1438 = sbr.rel (%p1436) target = $region92
      $region91: #{tpu_custom_call.1} parent=5 // pred_region
        %s1439 = ssub.s32 %s24, 2
        // Predicated region
        $region93: #{tpu_custom_call.1} parent=91 // pred_check
          %p1440 = pneg %p331
        $region94: #{tpu_custom_call.1} parent=91 // pred_check_branch
          %1442 = sbr.rel (%p1440) target = $region96
        $region95: #{tpu_custom_call.1} parent=91 // pred_region
          %s1443 = sand.u32 %s316, 1
          %s1444 = scalar_lea.sflag [#allocation5], %s1443
          %s1445 = sand.u32 %s316, 1
          %s1446 = smul.addr %s1445, 8
          %s1447 = scalar_lea.vmem [#allocation11], %s1446
          %1448 = dma.done %s1444, 128
        $region96: #{tpu_custom_call.1} parent=91 // pred_fallthru
          _
      $region92: #{tpu_custom_call.1} parent=5 // pred_fallthru
        _
    $region6: #{tpu_custom_call.1} parent=1 // loop_footer
      %s28 = sadd.s32 1, %s24
    $region7: #{tpu_custom_call.1} parent=1 // loop_footer_branch
      %23 = sbr.rel target = $region3
    $region8: #{tpu_custom_call.1} parent=1 // loop_exit
      _
    %1449 = vsyncpa [#allocation4], 1
    %s1450 = scalar_lea.sflag [#allocation4], 1
    %1451 = vsyncpa %s1450, 1
    %1452 = vsyncpa [#allocation7], 1
    %1453 = vsyncpa [#allocation10], 1
    %1454 = vsyncpa [#allocation5], 1
    %s1455 = scalar_lea.sflag [#allocation5], 1
    %1456 = vsyncpa %s1455, 1

</llo_original>
